<compile_context>
chip_gen: v7x
topology: tpu7x:2x2x1
jax: 0.10.0
libtpu: 0.0.40
codegen_flags: <defaults>
</compile_context>

<pallas_src>
import functools

import jax
import jax.numpy as jnp
from jax import lax
from jax.experimental import pallas as pl
from jax.experimental.pallas import tpu as pltpu


def _encoder_lstm_kernel(tok_ref,        # scalar-prefetch: (T,) token ids in SMEM
                         emb_ref,        # (V_pad, H)  VMEM-resident embedding table
                         h0_ref,         # (1, H)      initial hidden state
                         c0_ref,         # (1, H)      initial cell state
                         w_ref,          # (2H, 4H)    fused [W_ih^T ; W_hh^T]
                         bias_ref,       # (1, 4H)     b_ih + b_hh
                         out_seq_ref,    # (T_pad, H)  per-step hidden states
                         out_c_ref,      # (1, H)      final cell state
                         xh_scr,         # VMEM (1, 2H) f32: [x | h] slab (h persists)
                         c_scr,          # VMEM (1, H)  f32: carried cell state
                         *, seq_len, hidden):
    H = hidden

    # Initialize the carried state (single grid step, so no pl.when needed).
    xh_scr[:, H:] = h0_ref[...].astype(jnp.float32)
    c_scr[...] = c0_ref[...].astype(jnp.float32)

    def step(t, carry):
        tok = tok_ref[t]                                        # SMEM scalar read
        # In-kernel embedding gather from the VMEM-resident table.
        xh_scr[:, :H] = emb_ref[pl.ds(tok, 1), :].astype(jnp.float32)

        # Fused input/recurrent matmul: (1, 2H) x (2H, 4H) -> (1, 4H) on the MXU.
        gates = (jnp.dot(xh_scr[...], w_ref[...],
                         preferred_element_type=jnp.float32)
                 + bias_ref[...])

        # PyTorch gate order [i, f, g, o]; slices are 128-lane aligned (H % 128 == 0).
        i_g = jax.nn.sigmoid(gates[:, 0 * H:1 * H])
        f_g = jax.nn.sigmoid(gates[:, 1 * H:2 * H])
        g_g = jnp.tanh(gates[:, 2 * H:3 * H])
        o_g = jax.nn.sigmoid(gates[:, 3 * H:4 * H])

        c_new = f_g * c_scr[...] + i_g * g_g
        h_new = o_g * jnp.tanh(c_new)

        c_scr[...] = c_new
        xh_scr[:, H:] = h_new                                   # h carried in the slab
        out_seq_ref[pl.ds(t, 1), :] = h_new.astype(out_seq_ref.dtype)
        return carry

    # Modest unroll lets the LLO scheduler overlap step t's VPU/EUP tail with
    # step t+1's MXU push / token read (matters most on v5e's single vst slot).
    lax.fori_loop(0, seq_len, step, 0, unroll=(2 if seq_len >= 2 else 1))

    # Final cell state is stored exactly once.
    out_c_ref[...] = c_scr[...].astype(out_c_ref.dtype)


def encoder_rnn_forward_sequence(tokens, hidden, prepared):
    """Run the EncoderRNN step over a whole token sequence in ONE pallas_call.

    tokens:   int (T,) token indices
    hidden:   (h0, c0) each (1, 1, H)
    prepared: dict from prepare_params()
    Returns (outputs, (h_T, c_T)) with outputs (T, 1, H), h_T/c_T (1, 1, H).
    """
    emb = prepared["embedding"]              # (V_pad, H), f32
    w = prepared["w_fused"]                  # (2H, 4H)
    bias = prepared["bias"]                  # (1, 4H)
    V = prepared["vocab_size"]
    V_pad, H = emb.shape
    assert H % 128 == 0, "gate slicing / lane alignment assumes H % 128 == 0"

    # NOTE: out-of-range ids are clamped (reads row V-1) rather than raising.
    tokens = jnp.clip(jnp.asarray(tokens, jnp.int32).reshape(-1), 0, V - 1)
    T = int(tokens.shape[0])
    assert T >= 1
    T_pad = ((T + 7) // 8) * 8               # sublane-friendly output slab

    h0 = hidden[0].reshape(1, H).astype(jnp.float32)
    c0 = hidden[1].reshape(1, H).astype(jnp.float32)

    kernel = functools.partial(_encoder_lstm_kernel, seq_len=T, hidden=H)

    # Single grid step; every input is VMEM-resident for the whole sequence, so
    # multi-buffering is irrelevant (one pipeline iteration total).
    # TODO(synk): for very long sequences, chunk T across the grid axis so the
    # (T_chunk, H) output block and the loop trip count stay VMEM/rollable-sized.
    grid_spec = pltpu.PrefetchScalarGridSpec(
        num_scalar_prefetch=1,
        grid=(1,),
        in_specs=[
            pl.BlockSpec((V_pad, H), lambda i, tok: (0, 0)),        # embedding table
            pl.BlockSpec((1, H), lambda i, tok: (0, 0)),            # h0
            pl.BlockSpec((1, H), lambda i, tok: (0, 0)),            # c0
            pl.BlockSpec((2 * H, 4 * H), lambda i, tok: (0, 0)),    # fused W
            pl.BlockSpec((1, 4 * H), lambda i, tok: (0, 0)),        # bias
        ],
        out_specs=[
            pl.BlockSpec((T_pad, H), lambda i, tok: (0, 0)),        # per-step h slab
            pl.BlockSpec((1, H), lambda i, tok: (0, 0)),            # final cell state
        ],
        scratch_shapes=[
            pltpu.VMEM((1, 2 * H), jnp.float32),   # [x | h] slab
            pltpu.VMEM((1, H), jnp.float32),       # carried c
        ],
    )

    out_seq, c_n = pl.pallas_call(
        kernel,
        out_shape=(jax.ShapeDtypeStruct((T_pad, H), jnp.float32),
                   jax.ShapeDtypeStruct((1, H), jnp.float32)),
        grid_spec=grid_spec,
        compiler_params=pltpu.CompilerParams(
            dimension_semantics=("arbitrary",),     # sequential recurrence
            vmem_limit_bytes=32 * 1024 * 1024),     # explicit; safe on v5e/v6e/v7x
    )(tokens, emb, h0, c0, w, bias)

    out_seq = out_seq[:T].reshape(T, 1, H)          # drop sublane padding rows
    h_n = out_seq[-1].reshape(1, 1, H)
    return out_seq, (h_n, c_n.reshape(1, 1, H))


def encoder_rnn_forward(token, hidden, prepared):
    """Exact EncoderRNN.forward(input, hidden) semantics: one token, one step."""
    H = prepared["embedding"].shape[1]
    out_seq, (h_n, c_n) = encoder_rnn_forward_sequence(
        jnp.asarray(token, jnp.int32).reshape(1), hidden, prepared)
    return out_seq.reshape(1, 1, H), (h_n, c_n)


def init_params(key, input_size, hidden_size):
    """Synthetic init mirroring nn.Embedding + nn.LSTM parameter shapes."""
    k_emb, k_wih, k_whh, k_bih, k_bhh = jax.random.split(key, 5)
    H = hidden_size
    bound = 1.0 / jnp.sqrt(H)
    return {
        "embedding": jax.random.normal(k_emb, (input_size, H), jnp.float32),
        "w_ih": jax.random.uniform(k_wih, (4 * H, H), jnp.float32, -bound, bound),
        "w_hh": jax.random.uniform(k_whh, (4 * H, H), jnp.float32, -bound, bound),
        "b_ih": jax.random.uniform(k_bih, (4 * H,), jnp.float32, -bound, bound),
        "b_hh": jax.random.uniform(k_bhh, (4 * H,), jnp.float32, -bound, bound),
    }


def prepare_params(raw):
    """One-time weight prep (kept OUT of the hot forward path)."""
    emb = raw["embedding"].astype(jnp.float32)
    V, H = emb.shape
    V_pad = ((V + 7) // 8) * 8                      # sublane-tile-friendly table
    if V_pad != V:
        emb = jnp.pad(emb, ((0, V_pad - V), (0, 0)))
    w_fused = jnp.concatenate(
        [raw["w_ih"].T, raw["w_hh"].T], axis=0).astype(jnp.float32)      # (2H, 4H)
    bias = (raw["b_ih"] + raw["b_hh"]).reshape(1, 4 * H).astype(jnp.float32)
    # TODO(synk): for production H, store w_fused / emb in bf16 (MXU-native) to
    # halve the resident VMEM footprint; gate math stays f32 in the kernel.
    return {"embedding": emb, "w_fused": w_fused, "bias": bias, "vocab_size": V}


def _reference_step(token, h, c, raw):
    """Pure-JAX single LSTM step (PyTorch semantics) for correctness checks."""
    H = raw["embedding"].shape[1]
    x = raw["embedding"][token].reshape(1, H)
    gates = (x @ raw["w_ih"].T + h @ raw["w_hh"].T
             + raw["b_ih"] + raw["b_hh"])
    i_g = jax.nn.sigmoid(gates[:, 0 * H:1 * H])
    f_g = jax.nn.sigmoid(gates[:, 1 * H:2 * H])
    g_g = jnp.tanh(gates[:, 2 * H:3 * H])
    o_g = jax.nn.sigmoid(gates[:, 3 * H:4 * H])
    c_new = f_g * c + i_g * g_g
    h_new = o_g * jnp.tanh(c_new)
    return h_new, c_new


if __name__ == "__main__":
    vocab_size = 64
    hidden_size = 256   # matches the module's hidden_size; 4H gate slices 128-aligned
    seq_len = 8

    key = jax.random.PRNGKey(0)
    raw = init_params(key, vocab_size, hidden_size)
    prepared = prepare_params(raw)   # fuse/transpose/cast weights exactly once

    # initHidden(): zeros (1, 1, H) for both h0 and c0
    h0 = jnp.zeros((1, 1, hidden_size), jnp.float32)
    c0 = jnp.zeros((1, 1, hidden_size), jnp.float32)

    # --- 1) single-token forward: exact PyTorch EncoderRNN.forward semantics ---
    token = jnp.int32(7)
    output, (h_n, c_n) = encoder_rnn_forward(token, (h0, c0), prepared)
    jax.block_until_ready((output, h_n, c_n))

    ref_h, ref_c = _reference_step(7, jnp.zeros((1, hidden_size)),
                                   jnp.zeros((1, hidden_size)), raw)
    assert output.shape == (1, 1, hidden_size)
    assert h_n.shape == (1, 1, hidden_size) and c_n.shape == (1, 1, hidden_size)
    assert jnp.allclose(output.reshape(1, hidden_size), ref_h, atol=1e-4)
    assert jnp.allclose(h_n.reshape(1, hidden_size), ref_h, atol=1e-4)
    assert jnp.allclose(c_n.reshape(1, hidden_size), ref_c, atol=1e-4)

    # --- 2) whole-sequence encode in ONE grid step (in-kernel timestep loop) ---
    tokens = jax.random.randint(jax.random.PRNGKey(1), (seq_len,), 0,
                                vocab_size, jnp.int32)
    out_seq, (h_T, c_T) = encoder_rnn_forward_sequence(tokens, (h0, c0), prepared)
    jax.block_until_ready((out_seq, h_T, c_T))

    h_ref = jnp.zeros((1, hidden_size), jnp.float32)
    c_ref = jnp.zeros((1, hidden_size), jnp.float32)
    ref_outputs = []
    for tk in tokens.tolist():
        h_ref, c_ref = _reference_step(tk, h_ref, c_ref, raw)
        ref_outputs.append(h_ref)
    ref_seq = jnp.stack(ref_outputs, axis=0)          # (T, 1, H)

    assert out_seq.shape == (seq_len, 1, hidden_size)
    assert jnp.allclose(out_seq, ref_seq, atol=1e-4)
    assert jnp.allclose(h_T.reshape(1, hidden_size), h_ref, atol=1e-4)
    assert jnp.allclose(c_T.reshape(1, hidden_size), c_ref, atol=1e-4)

    # TODO(synk): batching >=8 independent sequences along the sublane axis (and a
    # "parallel" batch grid axis for v7x's 2 TensorCores) would fill full (8,128)
    # vregs and the MXU rows; the module's forward is strictly batch=1.

    print("KERNEL_OK")
</pallas_src>

<mosaic_0001>
module attributes {stable_mosaic.version = 11 : i64} {
  func.func @_encoder_lstm_kernel(%arg0: i32, %arg1: memref<1xi32, #tpu.memory_space<smem>>, %arg2: memref<64x256xf32, #tpu.memory_space<vmem>>, %arg3: memref<1x256xf32, #tpu.memory_space<vmem>>, %arg4: memref<1x256xf32, #tpu.memory_space<vmem>>, %arg5: memref<512x1024xf32, #tpu.memory_space<vmem>>, %arg6: memref<1x1024xf32, #tpu.memory_space<vmem>>, %arg7: memref<8x256xf32, #tpu.memory_space<vmem>>, %arg8: memref<1x256xf32, #tpu.memory_space<vmem>>, %arg9: memref<1x512xf32, #tpu.memory_space<vmem>>, %arg10: memref<1x256xf32, #tpu.memory_space<vmem>>) attributes {dimension_semantics = [#tpu.dimension_semantics<arbitrary>], iteration_bounds = array<i64: 1>, scalar_prefetch = 1 : i64, scratch_operands = 2 : i64, tpu.core_type = #tpu.core_type<tc>, window_params = [{pipeline_mode = #tpu.pipeline_mode<synchronous>, transform_indices = @transform_0, window_bounds = array<i64: 64, 256>}, {pipeline_mode = #tpu.pipeline_mode<synchronous>, transform_indices = @transform_1, window_bounds = array<i64: 1, 256>}, {pipeline_mode = #tpu.pipeline_mode<synchronous>, transform_indices = @transform_2, window_bounds = array<i64: 1, 256>}, {pipeline_mode = #tpu.pipeline_mode<synchronous>, transform_indices = @transform_3, window_bounds = array<i64: 512, 1024>}, {pipeline_mode = #tpu.pipeline_mode<synchronous>, transform_indices = @transform_4, window_bounds = array<i64: 1, 1024>}, {pipeline_mode = #tpu.pipeline_mode<synchronous>, transform_indices = @transform_5, window_bounds = array<i64: 8, 256>}, {pipeline_mode = #tpu.pipeline_mode<synchronous>, transform_indices = @transform_6, window_bounds = array<i64: 1, 256>}]} {
    %c0 = arith.constant 0 : index
    %c0_0 = arith.constant 0 : index
    %0 = vector.load %arg3[%c0, %c0_0] : memref<1x256xf32, #tpu.memory_space<vmem>>, vector<1x256xf32>
    %c0_1 = arith.constant 0 : index
    %c256 = arith.constant 256 : index
    %1 = vector.load %arg9[%c0_1, %c256] : memref<1x512xf32, #tpu.memory_space<vmem>>, vector<1x256xf32>
    tpu.vector_store %arg9[%c0_1, %c256], %0 {strides = array<i32>} : memref<1x512xf32, #tpu.memory_space<vmem>>, vector<1x256xf32>,
    %c0_2 = arith.constant 0 : index
    %c0_3 = arith.constant 0 : index
    %2 = vector.load %arg4[%c0_2, %c0_3] : memref<1x256xf32, #tpu.memory_space<vmem>>, vector<1x256xf32>
    %c0_4 = arith.constant 0 : index
    %c0_5 = arith.constant 0 : index
    %3 = vector.load %arg10[%c0_4, %c0_5] : memref<1x256xf32, #tpu.memory_space<vmem>>, vector<1x256xf32>
    tpu.vector_store %arg10[%c0_4, %c0_5], %2 {strides = array<i32>} : memref<1x256xf32, #tpu.memory_space<vmem>>, vector<1x256xf32>,
    %c0_i32 = arith.constant 0 : i32
    %4 = arith.index_cast %c0_i32 : i32 to index
    %5 = memref.load %arg1[%4] : memref<1xi32, #tpu.memory_space<smem>>
    %6 = arith.index_cast %5 : i32 to index
    %c0_6 = arith.constant 0 : index
    %7 = vector.load %arg2[%6, %c0_6] : memref<64x256xf32, #tpu.memory_space<vmem>>, vector<1x256xf32>
    %c0_7 = arith.constant 0 : index
    %c0_8 = arith.constant 0 : index
    %8 = vector.load %arg9[%c0_7, %c0_8] : memref<1x512xf32, #tpu.memory_space<vmem>>, vector<1x256xf32>
    tpu.vector_store %arg9[%c0_7, %c0_8], %7 {strides = array<i32>} : memref<1x512xf32, #tpu.memory_space<vmem>>, vector<1x256xf32>,
    %c0_9 = arith.constant 0 : index
    %c0_10 = arith.constant 0 : index
    %9 = vector.load %arg9[%c0_9, %c0_10] : memref<1x512xf32, #tpu.memory_space<vmem>>, vector<1x512xf32>
    %c0_11 = arith.constant 0 : index
    %c0_12 = arith.constant 0 : index
    %10 = vector.load %arg5[%c0_11, %c0_12] : memref<512x1024xf32, #tpu.memory_space<vmem>>, vector<512x1024xf32>
    %cst = arith.constant dense<0.000000e+00> : vector<1x1024xf32>
    %11 = tpu.matmul %9, %10, %cst {dimension_numbers = #tpu.dot_dimension_numbers<[1], [0], [0], [1], [0, 0, 1, 1], [], []>} : vector<1x512xf32>, vector<512x1024xf32>, vector<1x1024xf32> -> vector<1x1024xf32>
    %c0_13 = arith.constant 0 : index
    %c0_14 = arith.constant 0 : index
    %12 = vector.load %arg6[%c0_13, %c0_14] : memref<1x1024xf32, #tpu.memory_space<vmem>>, vector<1x1024xf32>
    %13 = arith.addf %11, %12 : vector<1x1024xf32>
    %14 = vector.extract_strided_slice %13 {offsets = [0, 0], sizes = [1, 256], strides = [1, 1]} : vector<1x1024xf32> to vector<1x256xf32>
    %15 = arith.negf %14 : vector<1x256xf32>
    %16 = math.exp %15 : vector<1x256xf32>
    %cst_15 = arith.constant 1.000000e+00 : f32
    %17 = vector.broadcast %cst_15 : f32 to vector<1x256xf32>
    %18 = arith.addf %17, %16 : vector<1x256xf32>
    %19 = arith.divf %17, %18 : vector<1x256xf32>
    %20 = vector.extract_strided_slice %13 {offsets = [0, 256], sizes = [1, 256], strides = [1, 1]} : vector<1x1024xf32> to vector<1x256xf32>
    %21 = arith.negf %20 : vector<1x256xf32>
    %22 = math.exp %21 : vector<1x256xf32>
    %cst_16 = arith.constant 1.000000e+00 : f32
    %23 = vector.broadcast %cst_16 : f32 to vector<1x256xf32>
    %24 = arith.addf %23, %22 : vector<1x256xf32>
    %25 = arith.divf %23, %24 : vector<1x256xf32>
    %26 = vector.extract_strided_slice %13 {offsets = [0, 512], sizes = [1, 256], strides = [1, 1]} : vector<1x1024xf32> to vector<1x256xf32>
    %27 = math.tanh %26 : vector<1x256xf32>
    %28 = vector.extract_strided_slice %13 {offsets = [0, 768], sizes = [1, 256], strides = [1, 1]} : vector<1x1024xf32> to vector<1x256xf32>
    %29 = arith.negf %28 : vector<1x256xf32>
    %30 = math.exp %29 : vector<1x256xf32>
    %cst_17 = arith.constant 1.000000e+00 : f32
    %31 = vector.broadcast %cst_17 : f32 to vector<1x256xf32>
    %32 = arith.addf %31, %30 : vector<1x256xf32>
    %33 = arith.divf %31, %32 : vector<1x256xf32>
    %c0_18 = arith.constant 0 : index
    %c0_19 = arith.constant 0 : index
    %34 = vector.load %arg10[%c0_18, %c0_19] : memref<1x256xf32, #tpu.memory_space<vmem>>, vector<1x256xf32>
    %35 = arith.mulf %25, %34 : vector<1x256xf32>
    %36 = arith.mulf %19, %27 : vector<1x256xf32>
    %37 = arith.addf %35, %36 : vector<1x256xf32>
    %38 = math.tanh %37 : vector<1x256xf32>
    %39 = arith.mulf %33, %38 : vector<1x256xf32>
    %c0_20 = arith.constant 0 : index
    %c0_21 = arith.constant 0 : index
    %40 = vector.load %arg10[%c0_20, %c0_21] : memref<1x256xf32, #tpu.memory_space<vmem>>, vector<1x256xf32>
    tpu.vector_store %arg10[%c0_20, %c0_21], %37 {strides = array<i32>} : memref<1x256xf32, #tpu.memory_space<vmem>>, vector<1x256xf32>,
    %c0_22 = arith.constant 0 : index
    %c256_23 = arith.constant 256 : index
    %41 = vector.load %arg9[%c0_22, %c256_23] : memref<1x512xf32, #tpu.memory_space<vmem>>, vector<1x256xf32>
    tpu.vector_store %arg9[%c0_22, %c256_23], %39 {strides = array<i32>} : memref<1x512xf32, #tpu.memory_space<vmem>>, vector<1x256xf32>,
    %42 = arith.index_cast %c0_i32 : i32 to index
    %c0_24 = arith.constant 0 : index
    %43 = vector.load %arg7[%42, %c0_24] : memref<8x256xf32, #tpu.memory_space<vmem>>, vector<1x256xf32>
    tpu.vector_store %arg7[%42, %c0_24], %39 {strides = array<i32>} : memref<8x256xf32, #tpu.memory_space<vmem>>, vector<1x256xf32>,
    %c1_i32 = arith.constant 1 : i32
    %c0_25 = arith.constant 0 : index
    %c0_26 = arith.constant 0 : index
    %44 = vector.load %arg10[%c0_25, %c0_26] : memref<1x256xf32, #tpu.memory_space<vmem>>, vector<1x256xf32>
    %c0_27 = arith.constant 0 : index
    %c0_28 = arith.constant 0 : index
    %45 = vector.load %arg8[%c0_27, %c0_28] : memref<1x256xf32, #tpu.memory_space<vmem>>, vector<1x256xf32>
    tpu.vector_store %arg8[%c0_27, %c0_28], %44 {strides = array<i32>} : memref<1x256xf32, #tpu.memory_space<vmem>>, vector<1x256xf32>,
    return
  }
  func.func @transform_0(%arg0: i32, %arg1: memref<1xi32, #tpu.memory_space<smem>>) -> (i32, i32) {
    %c0_i32 = arith.constant 0 : i32
    %c0_i32_0 = arith.constant 0 : i32
    %c0_i32_1 = arith.constant 0 : i32
    return %c0_i32, %c0_i32_0 : i32, i32
  }
  func.func @transform_1(%arg0: i32, %arg1: memref<1xi32, #tpu.memory_space<smem>>) -> (i32, i32) {
    %c0_i32 = arith.constant 0 : i32
    %c0_i32_0 = arith.constant 0 : i32
    %c0_i32_1 = arith.constant 0 : i32
    return %c0_i32, %c0_i32_0 : i32, i32
  }
  func.func @transform_2(%arg0: i32, %arg1: memref<1xi32, #tpu.memory_space<smem>>) -> (i32, i32) {
    %c0_i32 = arith.constant 0 : i32
    %c0_i32_0 = arith.constant 0 : i32
    %c0_i32_1 = arith.constant 0 : i32
    return %c0_i32, %c0_i32_0 : i32, i32
  }
  func.func @transform_3(%arg0: i32, %arg1: memref<1xi32, #tpu.memory_space<smem>>) -> (i32, i32) {
    %c0_i32 = arith.constant 0 : i32
    %c0_i32_0 = arith.constant 0 : i32
    %c0_i32_1 = arith.constant 0 : i32
    return %c0_i32, %c0_i32_0 : i32, i32
  }
  func.func @transform_4(%arg0: i32, %arg1: memref<1xi32, #tpu.memory_space<smem>>) -> (i32, i32) {
    %c0_i32 = arith.constant 0 : i32
    %c0_i32_0 = arith.constant 0 : i32
    %c0_i32_1 = arith.constant 0 : i32
    return %c0_i32, %c0_i32_0 : i32, i32
  }
  func.func @transform_5(%arg0: i32, %arg1: memref<1xi32, #tpu.memory_space<smem>>) -> (i32, i32) {
    %c0_i32 = arith.constant 0 : i32
    %c0_i32_0 = arith.constant 0 : i32
    %c0_i32_1 = arith.constant 0 : i32
    return %c0_i32, %c0_i32_0 : i32, i32
  }
  func.func @transform_6(%arg0: i32, %arg1: memref<1xi32, #tpu.memory_space<smem>>) -> (i32, i32) {
    %c0_i32 = arith.constant 0 : i32
    %c0_i32_0 = arith.constant 0 : i32
    %c0_i32_1 = arith.constant 0 : i32
    return %c0_i32, %c0_i32_0 : i32, i32
  }
}

</mosaic_0001>

<llo_original>
// kernel: tpu_custom_call.1
$region0: #{tpu_custom_call.1}
  #allocation0 [shape = 'u32[]', space=smem, size = 0x4, offset = 0x4, fixed_abs, tag = 'smem constant byte address 0x4 - core index']
  #allocation1 [shape = 'u32[144,128]{1,0:T(1,128)}', space=vmem, size = 0x12000, scoped, tag = 'internal scratch']
  #allocation2 [shape = 'f32[1,512]{1,0:T(1,128)}', space=vmem, size = 0x800, scoped, tag = 'scratch operand']
  #allocation3 [shape = 'f32[1,256]{1,0:T(1,128)}', space=vmem, size = 0x400, scoped, tag = 'scratch operand']
  #allocation4 [shape = 's32[1]{0}', space=sflag, size = 0x4, scoped, tag = 'scoped memory for tpu_custom_call.1']
  #allocation5 [shape = 's32[1]{0:T(128)S(6)}', space=smem, size = 0x200, scoped, tag = 'prefetched SMEM operand 0']
  %s0 = inlined_call_operand.<no memory space> [shape: s32[1], index: 0, kind: input, shape index: {}]
  %s1 = inlined_call_operand.hbm [shape: f32[64,256], index: 1, kind: input, shape index: {}]
  %s2 = inlined_call_operand.hbm [shape: f32[1,256], index: 2, kind: input, shape index: {}]
  %s3 = inlined_call_operand.hbm [shape: f32[1,256], index: 3, kind: input, shape index: {}]
  %s4 = inlined_call_operand.hbm [shape: f32[512,1024], index: 4, kind: input, shape index: {}]
  %s5 = inlined_call_operand.hbm [shape: f32[1,1024], index: 5, kind: input, shape index: {}]
  %s6 = inlined_call_operand.hbm [shape: f32[8,256], index: 6, kind: output, shape index: {0}]
  %s7 = inlined_call_operand.hbm [shape: f32[1,256], index: 7, kind: output, shape index: {1}]
  %8 = xla_tuple %s6, %s7
  %s9 = sld [smem:[#allocation0]]
  $region58: #{tpu_custom_call.1} parent=0
    _
  %s11 = ssub.s32 1, %s9
  %s12 = scalar_select 0, %s11, %s9
  %13 = sst [smem:[#allocation5]] %s0
  $region1: #{tpu_custom_call.1} parent=0
    #allocation6 [shape = 'u8[65536]{0}', space=vmem, size = 0x10000, scoped, tag = 'input window, operand 1, single buffered']
    #allocation7 [shape = 's32[1]{0}', space=sflag, size = 0x4, scoped, tag = 'scoped memory for tpu_custom_call.1']
    #allocation8 [shape = 's32[1]{0}', space=sflag, size = 0x4, scoped, tag = 'scoped memory for tpu_custom_call.1']
    #allocation9 [shape = 'u8[1024]{0}', space=vmem, size = 0x400, scoped, tag = 'input window, operand 2, single buffered']
    #allocation10 [shape = 's32[1]{0}', space=sflag, size = 0x4, scoped, tag = 'scoped memory for tpu_custom_call.1']
    #allocation11 [shape = 'u8[1024]{0}', space=vmem, size = 0x400, scoped, tag = 'input window, operand 3, single buffered']
    #allocation12 [shape = 'u8[2097152]{0}', space=vmem, size = 0x200000, scoped, tag = 'input window, operand 4, single buffered']
    #allocation13 [shape = 's32[1]{0}', space=sflag, size = 0x4, scoped, tag = 'scoped memory for tpu_custom_call.1']
    #allocation14 [shape = 'u8[4096]{0}', space=vmem, size = 0x1000, scoped, tag = 'input window, operand 5, single buffered']
    #allocation15 [shape = 'u8[8192]{0}', space=vmem, size = 0x2000, scoped, tag = 'output window, operand 0, single buffered']
    #allocation16 [shape = 'u8[1024]{0}', space=vmem, size = 0x400, scoped, tag = 'output window, operand 1, single buffered']
    #allocation17 [shape = 's32[1]{0}', space=sflag, size = 0x4, scoped, tag = 'scoped memory for tpu_custom_call.1']
    %14 = vsyncpa [#allocation7], 0
    %15 = vsyncpa [#allocation10], 0
    %16 = vsyncpa [#allocation13], 0
    %17 = vsyncpa [#allocation8], 0
    %18 = vsyncpa [#allocation17], 0
    // Predicated region
    $region2: #{tpu_custom_call.1} parent=1 // pred_check
      _
    $region3: #{tpu_custom_call.1} parent=1 // pred_check_branch
      %20 = sbr.rel (0) target = $region5
    $region4: #{tpu_custom_call.1} parent=1 // pred_region
      %s22 = ssub.s32 2048, 2048
      %23 = vsyncadd [#allocation7], %s22
      %s24 = sshll.u32 [#allocation6], 4
      %s25 = int_to_ptr.vmem [resolvable:$true] %s24
      %30 = dma.hbm_to_vmem [thread:$0]  %s1, 2048, %s25, [#allocation7], 256, 256, 16
    $region5: #{tpu_custom_call.1} parent=1 // pred_fallthru
      _
    // Predicated region
    $region6: #{tpu_custom_call.1} parent=1 // pred_check
      _
    $region7: #{tpu_custom_call.1} parent=1 // pred_check_branch
      %32 = sbr.rel (0) target = $region9
    $region8: #{tpu_custom_call.1} parent=1 // pred_region
      %s34 = ssub.s32 32, 32
      %35 = vsyncadd [#allocation10], %s34
      %s37 = sshll.u32 [#allocation9], 4
      %s38 = int_to_ptr.vmem [resolvable:$true] %s37
      %40 = dma.hbm_to_vmem [thread:$0]  %s2, 32, %s38, [#allocation10]
    $region9: #{tpu_custom_call.1} parent=1 // pred_fallthru
      _
    // Predicated region
    $region10: #{tpu_custom_call.1} parent=1 // pred_check
      _
    $region11: #{tpu_custom_call.1} parent=1 // pred_check_branch
      %42 = sbr.rel (0) target = $region13
    $region12: #{tpu_custom_call.1} parent=1 // pred_region
      %s44 = ssub.s32 32, 32
      %45 = vsyncadd [#allocation10], %s44
      %s47 = sshll.u32 [#allocation11], 4
      %s48 = int_to_ptr.vmem [resolvable:$true] %s47
      %50 = dma.hbm_to_vmem [thread:$0]  %s3, 32, %s48, [#allocation10]
    $region13: #{tpu_custom_call.1} parent=1 // pred_fallthru
      _
    // Predicated region
    $region14: #{tpu_custom_call.1} parent=1 // pred_check
      _
    $region15: #{tpu_custom_call.1} parent=1 // pred_check_branch
      %52 = sbr.rel (0) target = $region17
    $region16: #{tpu_custom_call.1} parent=1 // pred_region
      %s54 = ssub.s32 65536, 65536
      %55 = vsyncadd [#allocation13], %s54
      %s56 = sshll.u32 [#allocation12], 4
      %s57 = int_to_ptr.vmem [resolvable:$true] %s56
      %62 = dma.hbm_to_vmem [thread:$0]  %s4, 65536, %s57, [#allocation13], 1024, 1024, 64
    $region17: #{tpu_custom_call.1} parent=1 // pred_fallthru
      _
    // Predicated region
    $region18: #{tpu_custom_call.1} parent=1 // pred_check
      _
    $region19: #{tpu_custom_call.1} parent=1 // pred_check_branch
      %64 = sbr.rel (0) target = $region21
    $region20: #{tpu_custom_call.1} parent=1 // pred_region
      %s66 = ssub.s32 128, 128
      %67 = vsyncadd [#allocation13], %s66
      %s69 = sshll.u32 [#allocation14], 4
      %s70 = int_to_ptr.vmem [resolvable:$true] %s69
      %72 = dma.hbm_to_vmem [thread:$0]  %s5, 128, %s70, [#allocation13]
    $region21: #{tpu_custom_call.1} parent=1 // pred_fallthru
      _
    // Predicated region
    $region22: #{tpu_custom_call.1} parent=1 // pred_check
      _
    $region23: #{tpu_custom_call.1} parent=1 // pred_check_branch
      %74 = sbr.rel (0) target = $region25
    $region24: #{tpu_custom_call.1} parent=1 // pred_region
      %75 = dma.done [#allocation7], 2048
    $region25: #{tpu_custom_call.1} parent=1 // pred_fallthru
      _
    // Predicated region
    $region26: #{tpu_custom_call.1} parent=1 // pred_check
      _
    $region27: #{tpu_custom_call.1} parent=1 // pred_check_branch
      %77 = sbr.rel (0) target = $region29
    $region28: #{tpu_custom_call.1} parent=1 // pred_region
      %78 = dma.done [#allocation10], 32
    $region29: #{tpu_custom_call.1} parent=1 // pred_fallthru
      _
    // Predicated region
    $region30: #{tpu_custom_call.1} parent=1 // pred_check
      _
    $region31: #{tpu_custom_call.1} parent=1 // pred_check_branch
      %80 = sbr.rel (0) target = $region33
    $region32: #{tpu_custom_call.1} parent=1 // pred_region
      %81 = dma.done [#allocation10], 32
    $region33: #{tpu_custom_call.1} parent=1 // pred_fallthru
      _
    // Predicated region
    $region34: #{tpu_custom_call.1} parent=1 // pred_check
      _
    $region35: #{tpu_custom_call.1} parent=1 // pred_check_branch
      %83 = sbr.rel (0) target = $region37
    $region36: #{tpu_custom_call.1} parent=1 // pred_region
      %84 = dma.done [#allocation13], 65536
    $region37: #{tpu_custom_call.1} parent=1 // pred_fallthru
      _
    // Predicated region
    $region38: #{tpu_custom_call.1} parent=1 // pred_check
      _
    $region39: #{tpu_custom_call.1} parent=1 // pred_check_branch
      %86 = sbr.rel (0) target = $region41
    $region40: #{tpu_custom_call.1} parent=1 // pred_region
      %87 = dma.done [#allocation13], 128
    $region41: #{tpu_custom_call.1} parent=1 // pred_fallthru
      _
    %v88 = vld [vmem:[#allocation9] sm:$0x3]
    %v89 = vlaneseq
    %vm90 = vcmp.ge.s32.totalorder %v89, 0
    %vm91 = vcmp.lt.s32.totalorder %v89, 256
    %vm92 = vmand %vm90, %vm91
    %93 = vst.msk [vmem:[#allocation2 + $0x2] sm:$0x3] %vm92, %v88
    %v94 = vld [vmem:[#allocation11] sm:$0x3]
    %95 = vst.msk [vmem:[#allocation3] sm:$0x3] %vm92, %v94
    %s96 = sld [smem:[#allocation5]]
    %s97 = sshra.s32 %s96, 3
    %s98 = sand.u32 %s96, 7
    %s99 = sshra.s32 %s96, 3
    %s100 = sand.u32 %s96, 7
    %s101 = smul.u32 %s97, 2
    %s102 = smul.u32 %s101, 8
    %s103 = sadd.s32 %s102, %s100
    %s104 = scalar_lea.vmem [#allocation6], %s103
    %v105 = vld [vmem:[%s104] ss:$8 sm:$0x3]
    %106 = vst.msk [vmem:[#allocation2] sm:$0x3] %vm92, %v105
    %v107 = vld [vmem:[#allocation2] sm:$0xf]
    %v108 = vld [vmem:[#allocation12] sm:$0xff]
    %v109 = vld [vmem:[#allocation12 + $0x8] sm:$0xff]
    %v110 = vld [vmem:[#allocation12 + $0x10] sm:$0xff]
    %v111 = vld [vmem:[#allocation12 + $0x18] sm:$0xff]
    %v112 = vld [vmem:[#allocation12 + $0x20] sm:$0xff]
    %v113 = vld [vmem:[#allocation12 + $0x28] sm:$0xff]
    %v114 = vld [vmem:[#allocation12 + $0x30] sm:$0xff]
    %v115 = vld [vmem:[#allocation12 + $0x38] sm:$0xff]
    %v116 = vld [vmem:[#allocation12 + $0x40] sm:$0xff]
    %v117 = vld [vmem:[#allocation12 + $0x48] sm:$0xff]
    %v118 = vld [vmem:[#allocation12 + $0x50] sm:$0xff]
    %v119 = vld [vmem:[#allocation12 + $0x58] sm:$0xff]
    %v120 = vld [vmem:[#allocation12 + $0x60] sm:$0xff]
    %v121 = vld [vmem:[#allocation12 + $0x68] sm:$0xff]
    %v122 = vld [vmem:[#allocation12 + $0x70] sm:$0xff]
    %v123 = vld [vmem:[#allocation12 + $0x78] sm:$0xff]
    %v124 = vld [vmem:[#allocation12 + $0x80] sm:$0xff]
    %v125 = vld [vmem:[#allocation12 + $0x88] sm:$0xff]
    %v126 = vld [vmem:[#allocation12 + $0x90] sm:$0xff]
    %v127 = vld [vmem:[#allocation12 + $0x98] sm:$0xff]
    %v128 = vld [vmem:[#allocation12 + $0xa0] sm:$0xff]
    %v129 = vld [vmem:[#allocation12 + $0xa8] sm:$0xff]
    %v130 = vld [vmem:[#allocation12 + $0xb0] sm:$0xff]
    %v131 = vld [vmem:[#allocation12 + $0xb8] sm:$0xff]
    %v132 = vld [vmem:[#allocation12 + $0xc0] sm:$0xff]
    %v133 = vld [vmem:[#allocation12 + $0xc8] sm:$0xff]
    %v134 = vld [vmem:[#allocation12 + $0xd0] sm:$0xff]
    %v135 = vld [vmem:[#allocation12 + $0xd8] sm:$0xff]
    %v136 = vld [vmem:[#allocation12 + $0xe0] sm:$0xff]
    %v137 = vld [vmem:[#allocation12 + $0xe8] sm:$0xff]
    %v138 = vld [vmem:[#allocation12 + $0xf0] sm:$0xff]
    %v139 = vld [vmem:[#allocation12 + $0xf8] sm:$0xff]
    %v140 = vld [vmem:[#allocation12 + $0x100] sm:$0xff]
    %v141 = vld [vmem:[#allocation12 + $0x108] sm:$0xff]
    %v142 = vld [vmem:[#allocation12 + $0x110] sm:$0xff]
    %v143 = vld [vmem:[#allocation12 + $0x118] sm:$0xff]
    %v144 = vld [vmem:[#allocation12 + $0x120] sm:$0xff]
    %v145 = vld [vmem:[#allocation12 + $0x128] sm:$0xff]
    %v146 = vld [vmem:[#allocation12 + $0x130] sm:$0xff]
    %v147 = vld [vmem:[#allocation12 + $0x138] sm:$0xff]
    %v148 = vld [vmem:[#allocation12 + $0x140] sm:$0xff]
    %v149 = vld [vmem:[#allocation12 + $0x148] sm:$0xff]
    %v150 = vld [vmem:[#allocation12 + $0x150] sm:$0xff]
    %v151 = vld [vmem:[#allocation12 + $0x158] sm:$0xff]
    %v152 = vld [vmem:[#allocation12 + $0x160] sm:$0xff]
    %v153 = vld [vmem:[#allocation12 + $0x168] sm:$0xff]
    %v154 = vld [vmem:[#allocation12 + $0x170] sm:$0xff]
    %v155 = vld [vmem:[#allocation12 + $0x178] sm:$0xff]
    %v156 = vld [vmem:[#allocation12 + $0x180] sm:$0xff]
    %v157 = vld [vmem:[#allocation12 + $0x188] sm:$0xff]
    %v158 = vld [vmem:[#allocation12 + $0x190] sm:$0xff]
    %v159 = vld [vmem:[#allocation12 + $0x198] sm:$0xff]
    %v160 = vld [vmem:[#allocation12 + $0x1a0] sm:$0xff]
    %v161 = vld [vmem:[#allocation12 + $0x1a8] sm:$0xff]
    %v162 = vld [vmem:[#allocation12 + $0x1b0] sm:$0xff]
    %v163 = vld [vmem:[#allocation12 + $0x1b8] sm:$0xff]
    %v164 = vld [vmem:[#allocation12 + $0x1c0] sm:$0xff]
    %v165 = vld [vmem:[#allocation12 + $0x1c8] sm:$0xff]
    %v166 = vld [vmem:[#allocation12 + $0x1d0] sm:$0xff]
    %v167 = vld [vmem:[#allocation12 + $0x1d8] sm:$0xff]
    %v168 = vld [vmem:[#allocation12 + $0x1e0] sm:$0xff]
    %v169 = vld [vmem:[#allocation12 + $0x1e8] sm:$0xff]
    %v170 = vld [vmem:[#allocation12 + $0x1f0] sm:$0xff]
    %v171 = vld [vmem:[#allocation12 + $0x1f8] sm:$0xff]
    %v172 = vld [vmem:[#allocation12 + $0x200] sm:$0xff]
    %v173 = vld [vmem:[#allocation12 + $0x208] sm:$0xff]
    %v174 = vld [vmem:[#allocation12 + $0x210] sm:$0xff]
    %v175 = vld [vmem:[#allocation12 + $0x218] sm:$0xff]
    %v176 = vld [vmem:[#allocation12 + $0x220] sm:$0xff]
    %v177 = vld [vmem:[#allocation12 + $0x228] sm:$0xff]
    %v178 = vld [vmem:[#allocation12 + $0x230] sm:$0xff]
    %v179 = vld [vmem:[#allocation12 + $0x238] sm:$0xff]
    %v180 = vld [vmem:[#allocation12 + $0x240] sm:$0xff]
    %v181 = vld [vmem:[#allocation12 + $0x248] sm:$0xff]
    %v182 = vld [vmem:[#allocation12 + $0x250] sm:$0xff]
    %v183 = vld [vmem:[#allocation12 + $0x258] sm:$0xff]
    %v184 = vld [vmem:[#allocation12 + $0x260] sm:$0xff]
    %v185 = vld [vmem:[#allocation12 + $0x268] sm:$0xff]
    %v186 = vld [vmem:[#allocation12 + $0x270] sm:$0xff]
    %v187 = vld [vmem:[#allocation12 + $0x278] sm:$0xff]
    %v188 = vld [vmem:[#allocation12 + $0x280] sm:$0xff]
    %v189 = vld [vmem:[#allocation12 + $0x288] sm:$0xff]
    %v190 = vld [vmem:[#allocation12 + $0x290] sm:$0xff]
    %v191 = vld [vmem:[#allocation12 + $0x298] sm:$0xff]
    %v192 = vld [vmem:[#allocation12 + $0x2a0] sm:$0xff]
    %v193 = vld [vmem:[#allocation12 + $0x2a8] sm:$0xff]
    %v194 = vld [vmem:[#allocation12 + $0x2b0] sm:$0xff]
    %v195 = vld [vmem:[#allocation12 + $0x2b8] sm:$0xff]
    %v196 = vld [vmem:[#allocation12 + $0x2c0] sm:$0xff]
    %v197 = vld [vmem:[#allocation12 + $0x2c8] sm:$0xff]
    %v198 = vld [vmem:[#allocation12 + $0x2d0] sm:$0xff]
    %v199 = vld [vmem:[#allocation12 + $0x2d8] sm:$0xff]
    %v200 = vld [vmem:[#allocation12 + $0x2e0] sm:$0xff]
    %v201 = vld [vmem:[#allocation12 + $0x2e8] sm:$0xff]
    %v202 = vld [vmem:[#allocation12 + $0x2f0] sm:$0xff]
    %v203 = vld [vmem:[#allocation12 + $0x2f8] sm:$0xff]
    %v204 = vld [vmem:[#allocation12 + $0x300] sm:$0xff]
    %v205 = vld [vmem:[#allocation12 + $0x308] sm:$0xff]
    %v206 = vld [vmem:[#allocation12 + $0x310] sm:$0xff]
    %v207 = vld [vmem:[#allocation12 + $0x318] sm:$0xff]
    %v208 = vld [vmem:[#allocation12 + $0x320] sm:$0xff]
    %v209 = vld [vmem:[#allocation12 + $0x328] sm:$0xff]
    %v210 = vld [vmem:[#allocation12 + $0x330] sm:$0xff]
    %v211 = vld [vmem:[#allocation12 + $0x338] sm:$0xff]
    %v212 = vld [vmem:[#allocation12 + $0x340] sm:$0xff]
    %v213 = vld [vmem:[#allocation12 + $0x348] sm:$0xff]
    %v214 = vld [vmem:[#allocation12 + $0x350] sm:$0xff]
    %v215 = vld [vmem:[#allocation12 + $0x358] sm:$0xff]
    %v216 = vld [vmem:[#allocation12 + $0x360] sm:$0xff]
    %v217 = vld [vmem:[#allocation12 + $0x368] sm:$0xff]
    %v218 = vld [vmem:[#allocation12 + $0x370] sm:$0xff]
    %v219 = vld [vmem:[#allocation12 + $0x378] sm:$0xff]
    %v220 = vld [vmem:[#allocation12 + $0x380] sm:$0xff]
    %v221 = vld [vmem:[#allocation12 + $0x388] sm:$0xff]
    %v222 = vld [vmem:[#allocation12 + $0x390] sm:$0xff]
    %v223 = vld [vmem:[#allocation12 + $0x398] sm:$0xff]
    %v224 = vld [vmem:[#allocation12 + $0x3a0] sm:$0xff]
    %v225 = vld [vmem:[#allocation12 + $0x3a8] sm:$0xff]
    %v226 = vld [vmem:[#allocation12 + $0x3b0] sm:$0xff]
    %v227 = vld [vmem:[#allocation12 + $0x3b8] sm:$0xff]
    %v228 = vld [vmem:[#allocation12 + $0x3c0] sm:$0xff]
    %v229 = vld [vmem:[#allocation12 + $0x3c8] sm:$0xff]
    %v230 = vld [vmem:[#allocation12 + $0x3d0] sm:$0xff]
    %v231 = vld [vmem:[#allocation12 + $0x3d8] sm:$0xff]
    %v232 = vld [vmem:[#allocation12 + $0x3e0] sm:$0xff]
    %v233 = vld [vmem:[#allocation12 + $0x3e8] sm:$0xff]
    %v234 = vld [vmem:[#allocation12 + $0x3f0] sm:$0xff]
    %v235 = vld [vmem:[#allocation12 + $0x3f8] sm:$0xff]
    %v236 = vld [vmem:[#allocation12 + $0x400] sm:$0xff]
    %v237 = vld [vmem:[#allocation12 + $0x408] sm:$0xff]
    %v238 = vld [vmem:[#allocation12 + $0x410] sm:$0xff]
    %v239 = vld [vmem:[#allocation12 + $0x418] sm:$0xff]
    %v240 = vld [vmem:[#allocation12 + $0x420] sm:$0xff]
    %v241 = vld [vmem:[#allocation12 + $0x428] sm:$0xff]
    %v242 = vld [vmem:[#allocation12 + $0x430] sm:$0xff]
    %v243 = vld [vmem:[#allocation12 + $0x438] sm:$0xff]
    %v244 = vld [vmem:[#allocation12 + $0x440] sm:$0xff]
    %v245 = vld [vmem:[#allocation12 + $0x448] sm:$0xff]
    %v246 = vld [vmem:[#allocation12 + $0x450] sm:$0xff]
    %v247 = vld [vmem:[#allocation12 + $0x458] sm:$0xff]
    %v248 = vld [vmem:[#allocation12 + $0x460] sm:$0xff]
    %v249 = vld [vmem:[#allocation12 + $0x468] sm:$0xff]
    %v250 = vld [vmem:[#allocation12 + $0x470] sm:$0xff]
    %v251 = vld [vmem:[#allocation12 + $0x478] sm:$0xff]
    %v252 = vld [vmem:[#allocation12 + $0x480] sm:$0xff]
    %v253 = vld [vmem:[#allocation12 + $0x488] sm:$0xff]
    %v254 = vld [vmem:[#allocation12 + $0x490] sm:$0xff]
    %v255 = vld [vmem:[#allocation12 + $0x498] sm:$0xff]
    %v256 = vld [vmem:[#allocation12 + $0x4a0] sm:$0xff]
    %v257 = vld [vmem:[#allocation12 + $0x4a8] sm:$0xff]
    %v258 = vld [vmem:[#allocation12 + $0x4b0] sm:$0xff]
    %v259 = vld [vmem:[#allocation12 + $0x4b8] sm:$0xff]
    %v260 = vld [vmem:[#allocation12 + $0x4c0] sm:$0xff]
    %v261 = vld [vmem:[#allocation12 + $0x4c8] sm:$0xff]
    %v262 = vld [vmem:[#allocation12 + $0x4d0] sm:$0xff]
    %v263 = vld [vmem:[#allocation12 + $0x4d8] sm:$0xff]
    %v264 = vld [vmem:[#allocation12 + $0x4e0] sm:$0xff]
    %v265 = vld [vmem:[#allocation12 + $0x4e8] sm:$0xff]
    %v266 = vld [vmem:[#allocation12 + $0x4f0] sm:$0xff]
    %v267 = vld [vmem:[#allocation12 + $0x4f8] sm:$0xff]
    %v268 = vld [vmem:[#allocation12 + $0x500] sm:$0xff]
    %v269 = vld [vmem:[#allocation12 + $0x508] sm:$0xff]
    %v270 = vld [vmem:[#allocation12 + $0x510] sm:$0xff]
    %v271 = vld [vmem:[#allocation12 + $0x518] sm:$0xff]
    %v272 = vld [vmem:[#allocation12 + $0x520] sm:$0xff]
    %v273 = vld [vmem:[#allocation12 + $0x528] sm:$0xff]
    %v274 = vld [vmem:[#allocation12 + $0x530] sm:$0xff]
    %v275 = vld [vmem:[#allocation12 + $0x538] sm:$0xff]
    %v276 = vld [vmem:[#allocation12 + $0x540] sm:$0xff]
    %v277 = vld [vmem:[#allocation12 + $0x548] sm:$0xff]
    %v278 = vld [vmem:[#allocation12 + $0x550] sm:$0xff]
    %v279 = vld [vmem:[#allocation12 + $0x558] sm:$0xff]
    %v280 = vld [vmem:[#allocation12 + $0x560] sm:$0xff]
    %v281 = vld [vmem:[#allocation12 + $0x568] sm:$0xff]
    %v282 = vld [vmem:[#allocation12 + $0x570] sm:$0xff]
    %v283 = vld [vmem:[#allocation12 + $0x578] sm:$0xff]
    %v284 = vld [vmem:[#allocation12 + $0x580] sm:$0xff]
    %v285 = vld [vmem:[#allocation12 + $0x588] sm:$0xff]
    %v286 = vld [vmem:[#allocation12 + $0x590] sm:$0xff]
    %v287 = vld [vmem:[#allocation12 + $0x598] sm:$0xff]
    %v288 = vld [vmem:[#allocation12 + $0x5a0] sm:$0xff]
    %v289 = vld [vmem:[#allocation12 + $0x5a8] sm:$0xff]
    %v290 = vld [vmem:[#allocation12 + $0x5b0] sm:$0xff]
    %v291 = vld [vmem:[#allocation12 + $0x5b8] sm:$0xff]
    %v292 = vld [vmem:[#allocation12 + $0x5c0] sm:$0xff]
    %v293 = vld [vmem:[#allocation12 + $0x5c8] sm:$0xff]
    %v294 = vld [vmem:[#allocation12 + $0x5d0] sm:$0xff]
    %v295 = vld [vmem:[#allocation12 + $0x5d8] sm:$0xff]
    %v296 = vld [vmem:[#allocation12 + $0x5e0] sm:$0xff]
    %v297 = vld [vmem:[#allocation12 + $0x5e8] sm:$0xff]
    %v298 = vld [vmem:[#allocation12 + $0x5f0] sm:$0xff]
    %v299 = vld [vmem:[#allocation12 + $0x5f8] sm:$0xff]
    %v300 = vld [vmem:[#allocation12 + $0x600] sm:$0xff]
    %v301 = vld [vmem:[#allocation12 + $0x608] sm:$0xff]
    %v302 = vld [vmem:[#allocation12 + $0x610] sm:$0xff]
    %v303 = vld [vmem:[#allocation12 + $0x618] sm:$0xff]
    %v304 = vld [vmem:[#allocation12 + $0x620] sm:$0xff]
    %v305 = vld [vmem:[#allocation12 + $0x628] sm:$0xff]
    %v306 = vld [vmem:[#allocation12 + $0x630] sm:$0xff]
    %v307 = vld [vmem:[#allocation12 + $0x638] sm:$0xff]
    %v308 = vld [vmem:[#allocation12 + $0x640] sm:$0xff]
    %v309 = vld [vmem:[#allocation12 + $0x648] sm:$0xff]
    %v310 = vld [vmem:[#allocation12 + $0x650] sm:$0xff]
    %v311 = vld [vmem:[#allocation12 + $0x658] sm:$0xff]
    %v312 = vld [vmem:[#allocation12 + $0x660] sm:$0xff]
    %v313 = vld [vmem:[#allocation12 + $0x668] sm:$0xff]
    %v314 = vld [vmem:[#allocation12 + $0x670] sm:$0xff]
    %v315 = vld [vmem:[#allocation12 + $0x678] sm:$0xff]
    %v316 = vld [vmem:[#allocation12 + $0x680] sm:$0xff]
    %v317 = vld [vmem:[#allocation12 + $0x688] sm:$0xff]
    %v318 = vld [vmem:[#allocation12 + $0x690] sm:$0xff]
    %v319 = vld [vmem:[#allocation12 + $0x698] sm:$0xff]
    %v320 = vld [vmem:[#allocation12 + $0x6a0] sm:$0xff]
    %v321 = vld [vmem:[#allocation12 + $0x6a8] sm:$0xff]
    %v322 = vld [vmem:[#allocation12 + $0x6b0] sm:$0xff]
    %v323 = vld [vmem:[#allocation12 + $0x6b8] sm:$0xff]
    %v324 = vld [vmem:[#allocation12 + $0x6c0] sm:$0xff]
    %v325 = vld [vmem:[#allocation12 + $0x6c8] sm:$0xff]
    %v326 = vld [vmem:[#allocation12 + $0x6d0] sm:$0xff]
    %v327 = vld [vmem:[#allocation12 + $0x6d8] sm:$0xff]
    %v328 = vld [vmem:[#allocation12 + $0x6e0] sm:$0xff]
    %v329 = vld [vmem:[#allocation12 + $0x6e8] sm:$0xff]
    %v330 = vld [vmem:[#allocation12 + $0x6f0] sm:$0xff]
    %v331 = vld [vmem:[#allocation12 + $0x6f8] sm:$0xff]
    %v332 = vld [vmem:[#allocation12 + $0x700] sm:$0xff]
    %v333 = vld [vmem:[#allocation12 + $0x708] sm:$0xff]
    %v334 = vld [vmem:[#allocation12 + $0x710] sm:$0xff]
    %v335 = vld [vmem:[#allocation12 + $0x718] sm:$0xff]
    %v336 = vld [vmem:[#allocation12 + $0x720] sm:$0xff]
    %v337 = vld [vmem:[#allocation12 + $0x728] sm:$0xff]
    %v338 = vld [vmem:[#allocation12 + $0x730] sm:$0xff]
    %v339 = vld [vmem:[#allocation12 + $0x738] sm:$0xff]
    %v340 = vld [vmem:[#allocation12 + $0x740] sm:$0xff]
    %v341 = vld [vmem:[#allocation12 + $0x748] sm:$0xff]
    %v342 = vld [vmem:[#allocation12 + $0x750] sm:$0xff]
    %v343 = vld [vmem:[#allocation12 + $0x758] sm:$0xff]
    %v344 = vld [vmem:[#allocation12 + $0x760] sm:$0xff]
    %v345 = vld [vmem:[#allocation12 + $0x768] sm:$0xff]
    %v346 = vld [vmem:[#allocation12 + $0x770] sm:$0xff]
    %v347 = vld [vmem:[#allocation12 + $0x778] sm:$0xff]
    %v348 = vld [vmem:[#allocation12 + $0x780] sm:$0xff]
    %v349 = vld [vmem:[#allocation12 + $0x788] sm:$0xff]
    %v350 = vld [vmem:[#allocation12 + $0x790] sm:$0xff]
    %v351 = vld [vmem:[#allocation12 + $0x798] sm:$0xff]
    %v352 = vld [vmem:[#allocation12 + $0x7a0] sm:$0xff]
    %v353 = vld [vmem:[#allocation12 + $0x7a8] sm:$0xff]
    %v354 = vld [vmem:[#allocation12 + $0x7b0] sm:$0xff]
    %v355 = vld [vmem:[#allocation12 + $0x7b8] sm:$0xff]
    %v356 = vld [vmem:[#allocation12 + $0x7c0] sm:$0xff]
    %v357 = vld [vmem:[#allocation12 + $0x7c8] sm:$0xff]
    %v358 = vld [vmem:[#allocation12 + $0x7d0] sm:$0xff]
    %v359 = vld [vmem:[#allocation12 + $0x7d8] sm:$0xff]
    %v360 = vld [vmem:[#allocation12 + $0x7e0] sm:$0xff]
    %v361 = vld [vmem:[#allocation12 + $0x7e8] sm:$0xff]
    %v362 = vld [vmem:[#allocation12 + $0x7f0] sm:$0xff]
    %v363 = vld [vmem:[#allocation12 + $0x7f8] sm:$0xff]
    %v364 = vld [vmem:[#allocation12 + $0x800] sm:$0xff]
    %v365 = vld [vmem:[#allocation12 + $0x808] sm:$0xff]
    %v366 = vld [vmem:[#allocation12 + $0x810] sm:$0xff]
    %v367 = vld [vmem:[#allocation12 + $0x818] sm:$0xff]
    %v368 = vld [vmem:[#allocation12 + $0x820] sm:$0xff]
    %v369 = vld [vmem:[#allocation12 + $0x828] sm:$0xff]
    %v370 = vld [vmem:[#allocation12 + $0x830] sm:$0xff]
    %v371 = vld [vmem:[#allocation12 + $0x838] sm:$0xff]
    %v372 = vld [vmem:[#allocation12 + $0x840] sm:$0xff]
    %v373 = vld [vmem:[#allocation12 + $0x848] sm:$0xff]
    %v374 = vld [vmem:[#allocation12 + $0x850] sm:$0xff]
    %v375 = vld [vmem:[#allocation12 + $0x858] sm:$0xff]
    %v376 = vld [vmem:[#allocation12 + $0x860] sm:$0xff]
    %v377 = vld [vmem:[#allocation12 + $0x868] sm:$0xff]
    %v378 = vld [vmem:[#allocation12 + $0x870] sm:$0xff]
    %v379 = vld [vmem:[#allocation12 + $0x878] sm:$0xff]
    %v380 = vld [vmem:[#allocation12 + $0x880] sm:$0xff]
    %v381 = vld [vmem:[#allocation12 + $0x888] sm:$0xff]
    %v382 = vld [vmem:[#allocation12 + $0x890] sm:$0xff]
    %v383 = vld [vmem:[#allocation12 + $0x898] sm:$0xff]
    %v384 = vld [vmem:[#allocation12 + $0x8a0] sm:$0xff]
    %v385 = vld [vmem:[#allocation12 + $0x8a8] sm:$0xff]
    %v386 = vld [vmem:[#allocation12 + $0x8b0] sm:$0xff]
    %v387 = vld [vmem:[#allocation12 + $0x8b8] sm:$0xff]
    %v388 = vld [vmem:[#allocation12 + $0x8c0] sm:$0xff]
    %v389 = vld [vmem:[#allocation12 + $0x8c8] sm:$0xff]
    %v390 = vld [vmem:[#allocation12 + $0x8d0] sm:$0xff]
    %v391 = vld [vmem:[#allocation12 + $0x8d8] sm:$0xff]
    %v392 = vld [vmem:[#allocation12 + $0x8e0] sm:$0xff]
    %v393 = vld [vmem:[#allocation12 + $0x8e8] sm:$0xff]
    %v394 = vld [vmem:[#allocation12 + $0x8f0] sm:$0xff]
    %v395 = vld [vmem:[#allocation12 + $0x8f8] sm:$0xff]
    %v396 = vld [vmem:[#allocation12 + $0x900] sm:$0xff]
    %v397 = vld [vmem:[#allocation12 + $0x908] sm:$0xff]
    %v398 = vld [vmem:[#allocation12 + $0x910] sm:$0xff]
    %v399 = vld [vmem:[#allocation12 + $0x918] sm:$0xff]
    %v400 = vld [vmem:[#allocation12 + $0x920] sm:$0xff]
    %v401 = vld [vmem:[#allocation12 + $0x928] sm:$0xff]
    %v402 = vld [vmem:[#allocation12 + $0x930] sm:$0xff]
    %v403 = vld [vmem:[#allocation12 + $0x938] sm:$0xff]
    %v404 = vld [vmem:[#allocation12 + $0x940] sm:$0xff]
    %v405 = vld [vmem:[#allocation12 + $0x948] sm:$0xff]
    %v406 = vld [vmem:[#allocation12 + $0x950] sm:$0xff]
    %v407 = vld [vmem:[#allocation12 + $0x958] sm:$0xff]
    %v408 = vld [vmem:[#allocation12 + $0x960] sm:$0xff]
    %v409 = vld [vmem:[#allocation12 + $0x968] sm:$0xff]
    %v410 = vld [vmem:[#allocation12 + $0x970] sm:$0xff]
    %v411 = vld [vmem:[#allocation12 + $0x978] sm:$0xff]
    %v412 = vld [vmem:[#allocation12 + $0x980] sm:$0xff]
    %v413 = vld [vmem:[#allocation12 + $0x988] sm:$0xff]
    %v414 = vld [vmem:[#allocation12 + $0x990] sm:$0xff]
    %v415 = vld [vmem:[#allocation12 + $0x998] sm:$0xff]
    %v416 = vld [vmem:[#allocation12 + $0x9a0] sm:$0xff]
    %v417 = vld [vmem:[#allocation12 + $0x9a8] sm:$0xff]
    %v418 = vld [vmem:[#allocation12 + $0x9b0] sm:$0xff]
    %v419 = vld [vmem:[#allocation12 + $0x9b8] sm:$0xff]
    %v420 = vld [vmem:[#allocation12 + $0x9c0] sm:$0xff]
    %v421 = vld [vmem:[#allocation12 + $0x9c8] sm:$0xff]
    %v422 = vld [vmem:[#allocation12 + $0x9d0] sm:$0xff]
    %v423 = vld [vmem:[#allocation12 + $0x9d8] sm:$0xff]
    %v424 = vld [vmem:[#allocation12 + $0x9e0] sm:$0xff]
    %v425 = vld [vmem:[#allocation12 + $0x9e8] sm:$0xff]
    %v426 = vld [vmem:[#allocation12 + $0x9f0] sm:$0xff]
    %v427 = vld [vmem:[#allocation12 + $0x9f8] sm:$0xff]
    %v428 = vld [vmem:[#allocation12 + $0xa00] sm:$0xff]
    %v429 = vld [vmem:[#allocation12 + $0xa08] sm:$0xff]
    %v430 = vld [vmem:[#allocation12 + $0xa10] sm:$0xff]
    %v431 = vld [vmem:[#allocation12 + $0xa18] sm:$0xff]
    %v432 = vld [vmem:[#allocation12 + $0xa20] sm:$0xff]
    %v433 = vld [vmem:[#allocation12 + $0xa28] sm:$0xff]
    %v434 = vld [vmem:[#allocation12 + $0xa30] sm:$0xff]
    %v435 = vld [vmem:[#allocation12 + $0xa38] sm:$0xff]
    %v436 = vld [vmem:[#allocation12 + $0xa40] sm:$0xff]
    %v437 = vld [vmem:[#allocation12 + $0xa48] sm:$0xff]
    %v438 = vld [vmem:[#allocation12 + $0xa50] sm:$0xff]
    %v439 = vld [vmem:[#allocation12 + $0xa58] sm:$0xff]
    %v440 = vld [vmem:[#allocation12 + $0xa60] sm:$0xff]
    %v441 = vld [vmem:[#allocation12 + $0xa68] sm:$0xff]
    %v442 = vld [vmem:[#allocation12 + $0xa70] sm:$0xff]
    %v443 = vld [vmem:[#allocation12 + $0xa78] sm:$0xff]
    %v444 = vld [vmem:[#allocation12 + $0xa80] sm:$0xff]
    %v445 = vld [vmem:[#allocation12 + $0xa88] sm:$0xff]
    %v446 = vld [vmem:[#allocation12 + $0xa90] sm:$0xff]
    %v447 = vld [vmem:[#allocation12 + $0xa98] sm:$0xff]
    %v448 = vld [vmem:[#allocation12 + $0xaa0] sm:$0xff]
    %v449 = vld [vmem:[#allocation12 + $0xaa8] sm:$0xff]
    %v450 = vld [vmem:[#allocation12 + $0xab0] sm:$0xff]
    %v451 = vld [vmem:[#allocation12 + $0xab8] sm:$0xff]
    %v452 = vld [vmem:[#allocation12 + $0xac0] sm:$0xff]
    %v453 = vld [vmem:[#allocation12 + $0xac8] sm:$0xff]
    %v454 = vld [vmem:[#allocation12 + $0xad0] sm:$0xff]
    %v455 = vld [vmem:[#allocation12 + $0xad8] sm:$0xff]
    %v456 = vld [vmem:[#allocation12 + $0xae0] sm:$0xff]
    %v457 = vld [vmem:[#allocation12 + $0xae8] sm:$0xff]
    %v458 = vld [vmem:[#allocation12 + $0xaf0] sm:$0xff]
    %v459 = vld [vmem:[#allocation12 + $0xaf8] sm:$0xff]
    %v460 = vld [vmem:[#allocation12 + $0xb00] sm:$0xff]
    %v461 = vld [vmem:[#allocation12 + $0xb08] sm:$0xff]
    %v462 = vld [vmem:[#allocation12 + $0xb10] sm:$0xff]
    %v463 = vld [vmem:[#allocation12 + $0xb18] sm:$0xff]
    %v464 = vld [vmem:[#allocation12 + $0xb20] sm:$0xff]
    %v465 = vld [vmem:[#allocation12 + $0xb28] sm:$0xff]
    %v466 = vld [vmem:[#allocation12 + $0xb30] sm:$0xff]
    %v467 = vld [vmem:[#allocation12 + $0xb38] sm:$0xff]
    %v468 = vld [vmem:[#allocation12 + $0xb40] sm:$0xff]
    %v469 = vld [vmem:[#allocation12 + $0xb48] sm:$0xff]
    %v470 = vld [vmem:[#allocation12 + $0xb50] sm:$0xff]
    %v471 = vld [vmem:[#allocation12 + $0xb58] sm:$0xff]
    %v472 = vld [vmem:[#allocation12 + $0xb60] sm:$0xff]
    %v473 = vld [vmem:[#allocation12 + $0xb68] sm:$0xff]
    %v474 = vld [vmem:[#allocation12 + $0xb70] sm:$0xff]
    %v475 = vld [vmem:[#allocation12 + $0xb78] sm:$0xff]
    %v476 = vld [vmem:[#allocation12 + $0xb80] sm:$0xff]
    %v477 = vld [vmem:[#allocation12 + $0xb88] sm:$0xff]
    %v478 = vld [vmem:[#allocation12 + $0xb90] sm:$0xff]
    %v479 = vld [vmem:[#allocation12 + $0xb98] sm:$0xff]
    %v480 = vld [vmem:[#allocation12 + $0xba0] sm:$0xff]
    %v481 = vld [vmem:[#allocation12 + $0xba8] sm:$0xff]
    %v482 = vld [vmem:[#allocation12 + $0xbb0] sm:$0xff]
    %v483 = vld [vmem:[#allocation12 + $0xbb8] sm:$0xff]
    %v484 = vld [vmem:[#allocation12 + $0xbc0] sm:$0xff]
    %v485 = vld [vmem:[#allocation12 + $0xbc8] sm:$0xff]
    %v486 = vld [vmem:[#allocation12 + $0xbd0] sm:$0xff]
    %v487 = vld [vmem:[#allocation12 + $0xbd8] sm:$0xff]
    %v488 = vld [vmem:[#allocation12 + $0xbe0] sm:$0xff]
    %v489 = vld [vmem:[#allocation12 + $0xbe8] sm:$0xff]
    %v490 = vld [vmem:[#allocation12 + $0xbf0] sm:$0xff]
    %v491 = vld [vmem:[#allocation12 + $0xbf8] sm:$0xff]
    %v492 = vld [vmem:[#allocation12 + $0xc00] sm:$0xff]
    %v493 = vld [vmem:[#allocation12 + $0xc08] sm:$0xff]
    %v494 = vld [vmem:[#allocation12 + $0xc10] sm:$0xff]
    %v495 = vld [vmem:[#allocation12 + $0xc18] sm:$0xff]
    %v496 = vld [vmem:[#allocation12 + $0xc20] sm:$0xff]
    %v497 = vld [vmem:[#allocation12 + $0xc28] sm:$0xff]
    %v498 = vld [vmem:[#allocation12 + $0xc30] sm:$0xff]
    %v499 = vld [vmem:[#allocation12 + $0xc38] sm:$0xff]
    %v500 = vld [vmem:[#allocation12 + $0xc40] sm:$0xff]
    %v501 = vld [vmem:[#allocation12 + $0xc48] sm:$0xff]
    %v502 = vld [vmem:[#allocation12 + $0xc50] sm:$0xff]
    %v503 = vld [vmem:[#allocation12 + $0xc58] sm:$0xff]
    %v504 = vld [vmem:[#allocation12 + $0xc60] sm:$0xff]
    %v505 = vld [vmem:[#allocation12 + $0xc68] sm:$0xff]
    %v506 = vld [vmem:[#allocation12 + $0xc70] sm:$0xff]
    %v507 = vld [vmem:[#allocation12 + $0xc78] sm:$0xff]
    %v508 = vld [vmem:[#allocation12 + $0xc80] sm:$0xff]
    %v509 = vld [vmem:[#allocation12 + $0xc88] sm:$0xff]
    %v510 = vld [vmem:[#allocation12 + $0xc90] sm:$0xff]
    %v511 = vld [vmem:[#allocation12 + $0xc98] sm:$0xff]
    %v512 = vld [vmem:[#allocation12 + $0xca0] sm:$0xff]
    %v513 = vld [vmem:[#allocation12 + $0xca8] sm:$0xff]
    %v514 = vld [vmem:[#allocation12 + $0xcb0] sm:$0xff]
    %v515 = vld [vmem:[#allocation12 + $0xcb8] sm:$0xff]
    %v516 = vld [vmem:[#allocation12 + $0xcc0] sm:$0xff]
    %v517 = vld [vmem:[#allocation12 + $0xcc8] sm:$0xff]
    %v518 = vld [vmem:[#allocation12 + $0xcd0] sm:$0xff]
    %v519 = vld [vmem:[#allocation12 + $0xcd8] sm:$0xff]
    %v520 = vld [vmem:[#allocation12 + $0xce0] sm:$0xff]
    %v521 = vld [vmem:[#allocation12 + $0xce8] sm:$0xff]
    %v522 = vld [vmem:[#allocation12 + $0xcf0] sm:$0xff]
    %v523 = vld [vmem:[#allocation12 + $0xcf8] sm:$0xff]
    %v524 = vld [vmem:[#allocation12 + $0xd00] sm:$0xff]
    %v525 = vld [vmem:[#allocation12 + $0xd08] sm:$0xff]
    %v526 = vld [vmem:[#allocation12 + $0xd10] sm:$0xff]
    %v527 = vld [vmem:[#allocation12 + $0xd18] sm:$0xff]
    %v528 = vld [vmem:[#allocation12 + $0xd20] sm:$0xff]
    %v529 = vld [vmem:[#allocation12 + $0xd28] sm:$0xff]
    %v530 = vld [vmem:[#allocation12 + $0xd30] sm:$0xff]
    %v531 = vld [vmem:[#allocation12 + $0xd38] sm:$0xff]
    %v532 = vld [vmem:[#allocation12 + $0xd40] sm:$0xff]
    %v533 = vld [vmem:[#allocation12 + $0xd48] sm:$0xff]
    %v534 = vld [vmem:[#allocation12 + $0xd50] sm:$0xff]
    %v535 = vld [vmem:[#allocation12 + $0xd58] sm:$0xff]
    %v536 = vld [vmem:[#allocation12 + $0xd60] sm:$0xff]
    %v537 = vld [vmem:[#allocation12 + $0xd68] sm:$0xff]
    %v538 = vld [vmem:[#allocation12 + $0xd70] sm:$0xff]
    %v539 = vld [vmem:[#allocation12 + $0xd78] sm:$0xff]
    %v540 = vld [vmem:[#allocation12 + $0xd80] sm:$0xff]
    %v541 = vld [vmem:[#allocation12 + $0xd88] sm:$0xff]
    %v542 = vld [vmem:[#allocation12 + $0xd90] sm:$0xff]
    %v543 = vld [vmem:[#allocation12 + $0xd98] sm:$0xff]
    %v544 = vld [vmem:[#allocation12 + $0xda0] sm:$0xff]
    %v545 = vld [vmem:[#allocation12 + $0xda8] sm:$0xff]
    %v546 = vld [vmem:[#allocation12 + $0xdb0] sm:$0xff]
    %v547 = vld [vmem:[#allocation12 + $0xdb8] sm:$0xff]
    %v548 = vld [vmem:[#allocation12 + $0xdc0] sm:$0xff]
    %v549 = vld [vmem:[#allocation12 + $0xdc8] sm:$0xff]
    %v550 = vld [vmem:[#allocation12 + $0xdd0] sm:$0xff]
    %v551 = vld [vmem:[#allocation12 + $0xdd8] sm:$0xff]
    %v552 = vld [vmem:[#allocation12 + $0xde0] sm:$0xff]
    %v553 = vld [vmem:[#allocation12 + $0xde8] sm:$0xff]
    %v554 = vld [vmem:[#allocation12 + $0xdf0] sm:$0xff]
    %v555 = vld [vmem:[#allocation12 + $0xdf8] sm:$0xff]
    %v556 = vld [vmem:[#allocation12 + $0xe00] sm:$0xff]
    %v557 = vld [vmem:[#allocation12 + $0xe08] sm:$0xff]
    %v558 = vld [vmem:[#allocation12 + $0xe10] sm:$0xff]
    %v559 = vld [vmem:[#allocation12 + $0xe18] sm:$0xff]
    %v560 = vld [vmem:[#allocation12 + $0xe20] sm:$0xff]
    %v561 = vld [vmem:[#allocation12 + $0xe28] sm:$0xff]
    %v562 = vld [vmem:[#allocation12 + $0xe30] sm:$0xff]
    %v563 = vld [vmem:[#allocation12 + $0xe38] sm:$0xff]
    %v564 = vld [vmem:[#allocation12 + $0xe40] sm:$0xff]
    %v565 = vld [vmem:[#allocation12 + $0xe48] sm:$0xff]
    %v566 = vld [vmem:[#allocation12 + $0xe50] sm:$0xff]
    %v567 = vld [vmem:[#allocation12 + $0xe58] sm:$0xff]
    %v568 = vld [vmem:[#allocation12 + $0xe60] sm:$0xff]
    %v569 = vld [vmem:[#allocation12 + $0xe68] sm:$0xff]
    %v570 = vld [vmem:[#allocation12 + $0xe70] sm:$0xff]
    %v571 = vld [vmem:[#allocation12 + $0xe78] sm:$0xff]
    %v572 = vld [vmem:[#allocation12 + $0xe80] sm:$0xff]
    %v573 = vld [vmem:[#allocation12 + $0xe88] sm:$0xff]
    %v574 = vld [vmem:[#allocation12 + $0xe90] sm:$0xff]
    %v575 = vld [vmem:[#allocation12 + $0xe98] sm:$0xff]
    %v576 = vld [vmem:[#allocation12 + $0xea0] sm:$0xff]
    %v577 = vld [vmem:[#allocation12 + $0xea8] sm:$0xff]
    %v578 = vld [vmem:[#allocation12 + $0xeb0] sm:$0xff]
    %v579 = vld [vmem:[#allocation12 + $0xeb8] sm:$0xff]
    %v580 = vld [vmem:[#allocation12 + $0xec0] sm:$0xff]
    %v581 = vld [vmem:[#allocation12 + $0xec8] sm:$0xff]
    %v582 = vld [vmem:[#allocation12 + $0xed0] sm:$0xff]
    %v583 = vld [vmem:[#allocation12 + $0xed8] sm:$0xff]
    %v584 = vld [vmem:[#allocation12 + $0xee0] sm:$0xff]
    %v585 = vld [vmem:[#allocation12 + $0xee8] sm:$0xff]
    %v586 = vld [vmem:[#allocation12 + $0xef0] sm:$0xff]
    %v587 = vld [vmem:[#allocation12 + $0xef8] sm:$0xff]
    %v588 = vld [vmem:[#allocation12 + $0xf00] sm:$0xff]
    %v589 = vld [vmem:[#allocation12 + $0xf08] sm:$0xff]
    %v590 = vld [vmem:[#allocation12 + $0xf10] sm:$0xff]
    %v591 = vld [vmem:[#allocation12 + $0xf18] sm:$0xff]
    %v592 = vld [vmem:[#allocation12 + $0xf20] sm:$0xff]
    %v593 = vld [vmem:[#allocation12 + $0xf28] sm:$0xff]
    %v594 = vld [vmem:[#allocation12 + $0xf30] sm:$0xff]
    %v595 = vld [vmem:[#allocation12 + $0xf38] sm:$0xff]
    %v596 = vld [vmem:[#allocation12 + $0xf40] sm:$0xff]
    %v597 = vld [vmem:[#allocation12 + $0xf48] sm:$0xff]
    %v598 = vld [vmem:[#allocation12 + $0xf50] sm:$0xff]
    %v599 = vld [vmem:[#allocation12 + $0xf58] sm:$0xff]
    %v600 = vld [vmem:[#allocation12 + $0xf60] sm:$0xff]
    %v601 = vld [vmem:[#allocation12 + $0xf68] sm:$0xff]
    %v602 = vld [vmem:[#allocation12 + $0xf70] sm:$0xff]
    %v603 = vld [vmem:[#allocation12 + $0xf78] sm:$0xff]
    %v604 = vld [vmem:[#allocation12 + $0xf80] sm:$0xff]
    %v605 = vld [vmem:[#allocation12 + $0xf88] sm:$0xff]
    %v606 = vld [vmem:[#allocation12 + $0xf90] sm:$0xff]
    %v607 = vld [vmem:[#allocation12 + $0xf98] sm:$0xff]
    %v608 = vld [vmem:[#allocation12 + $0xfa0] sm:$0xff]
    %v609 = vld [vmem:[#allocation12 + $0xfa8] sm:$0xff]
    %v610 = vld [vmem:[#allocation12 + $0xfb0] sm:$0xff]
    %v611 = vld [vmem:[#allocation12 + $0xfb8] sm:$0xff]
    %v612 = vld [vmem:[#allocation12 + $0xfc0] sm:$0xff]
    %v613 = vld [vmem:[#allocation12 + $0xfc8] sm:$0xff]
    %v614 = vld [vmem:[#allocation12 + $0xfd0] sm:$0xff]
    %v615 = vld [vmem:[#allocation12 + $0xfd8] sm:$0xff]
    %v616 = vld [vmem:[#allocation12 + $0xfe0] sm:$0xff]
    %v617 = vld [vmem:[#allocation12 + $0xfe8] sm:$0xff]
    %v618 = vld [vmem:[#allocation12 + $0xff0] sm:$0xff]
    %v619 = vld [vmem:[#allocation12 + $0xff8] sm:$0xff]
    %v620 = vld [vmem:[#allocation14] sm:$0xff]
    %v622 = vlaneseq
    %v623 = vshrl.u32 %v622, 7
    %v624 = vsub.s32 0, %v623
    %v625 = vrot.slane %v107, %v624
    %v626 = vlaneseq
    %v627 = vshrl.u32 %v626, 7
    %v628 = vsub.s32 1, %v627
    %v629 = vrot.slane %v107, %v628
    %v630 = vlaneseq
    %v631 = vshrl.u32 %v630, 7
    %v632 = vsub.s32 2, %v631
    %v633 = vrot.slane %v107, %v632
    %v634 = vlaneseq
    %v635 = vshrl.u32 %v634, 7
    %v636 = vsub.s32 3, %v635
    %v637 = vrot.slane %v107, %v636
    %v643 = vlaneseq
    %v644 = vshrl.u32 %v643, 7
    %v645 = vsub.s32 0, %v644
    %v646 = vrot.slane %v620, %v645
    %v647 = vlaneseq
    %v648 = vshrl.u32 %v647, 7
    %v649 = vsub.s32 1, %v648
    %v650 = vrot.slane %v620, %v649
    %v651 = vlaneseq
    %v652 = vshrl.u32 %v651, 7
    %v653 = vsub.s32 2, %v652
    %v654 = vrot.slane %v620, %v653
    %v655 = vlaneseq
    %v656 = vshrl.u32 %v655, 7
    %v657 = vsub.s32 3, %v656
    %v658 = vrot.slane %v620, %v657
    %v659 = vlaneseq
    %v660 = vshrl.u32 %v659, 7
    %v661 = vsub.s32 4, %v660
    %v662 = vrot.slane %v620, %v661
    %v663 = vlaneseq
    %v664 = vshrl.u32 %v663, 7
    %v665 = vsub.s32 5, %v664
    %v666 = vrot.slane %v620, %v665
    %v667 = vlaneseq
    %v668 = vshrl.u32 %v667, 7
    %v669 = vsub.s32 6, %v668
    %v670 = vrot.slane %v620, %v669
    %v671 = vlaneseq
    %v672 = vshrl.u32 %v671, 7
    %v673 = vsub.s32 7, %v672
    %v674 = vrot.slane %v620, %v673
    %683 = vmatprep.subr.mxu0 %v109
    %684 = vmatpush1.msra.mxu0 %v108
    %685 = vmatprep.subr.mxu0 %v117
    %686 = vmatpush1.msra.mxu0 %v116
    %687 = vmatprep.subr.mxu0 %v125
    %688 = vmatpush1.msra.mxu0 %v124
    %689 = vmatprep.subr.mxu0 %v133
    %690 = vmatpush1.msra.mxu0 %v132
    %691 = vmatprep.subr.mxu0 %v141
    %692 = vmatpush1.msra.mxu0 %v140
    %693 = vmatprep.subr.mxu0 %v149
    %694 = vmatpush1.msra.mxu0 %v148
    %695 = vmatprep.subr.mxu0 %v157
    %696 = vmatpush1.msra.mxu0 %v156
    %697 = vmatprep.subr.mxu0 %v165
    %698 = vmatpush1.msra.mxu0 %v164
    %699 = vmatprep.subr.mxu0 %v173
    %700 = vmatpush1.msra.mxu0 %v172
    %701 = vmatprep.subr.mxu0 %v181
    %702 = vmatpush1.msra.mxu0 %v180
    %703 = vmatprep.subr.mxu0 %v189
    %704 = vmatpush1.msra.mxu0 %v188
    %705 = vmatprep.subr.mxu0 %v197
    %706 = vmatpush1.msra.mxu0 %v196
    %707 = vmatprep.subr.mxu0 %v205
    %708 = vmatpush1.msra.mxu0 %v204
    %709 = vmatprep.subr.mxu0 %v213
    %710 = vmatpush1.msra.mxu0 %v212
    %711 = vmatprep.subr.mxu0 %v221
    %712 = vmatpush1.msra.mxu0 %v220
    %713 = vmatprep.subr.mxu0 %v229
    %714 = vmatpush1.msra.mxu0 %v228
    %715 = vmatprep.subr.mxu0 %v237
    %716 = vmatpush1.msra.mxu0 %v236
    %717 = vmatprep.subr.mxu0 %v245
    %718 = vmatpush1.msra.mxu0 %v244
    %719 = vmatprep.subr.mxu0 %v253
    %720 = vmatpush1.msra.mxu0 %v252
    %721 = vmatprep.subr.mxu0 %v261
    %722 = vmatpush1.msra.mxu0 %v260
    %723 = vmatprep.subr.mxu0 %v269
    %724 = vmatpush1.msra.mxu0 %v268
    %725 = vmatprep.subr.mxu0 %v277
    %726 = vmatpush1.msra.mxu0 %v276
    %727 = vmatprep.subr.mxu0 %v285
    %728 = vmatpush1.msra.mxu0 %v284
    %729 = vmatprep.subr.mxu0 %v293
    %730 = vmatpush1.msra.mxu0 %v292
    %731 = vmatprep.subr.mxu0 %v301
    %732 = vmatpush1.msra.mxu0 %v300
    %733 = vmatprep.subr.mxu0 %v309
    %734 = vmatpush1.msra.mxu0 %v308
    %735 = vmatprep.subr.mxu0 %v317
    %736 = vmatpush1.msra.mxu0 %v316
    %737 = vmatprep.subr.mxu0 %v325
    %738 = vmatpush1.msra.mxu0 %v324
    %739 = vmatprep.subr.mxu0 %v333
    %740 = vmatpush1.msra.mxu0 %v332
    %741 = vmatprep.subr.mxu0 %v341
    %742 = vmatpush1.msra.mxu0 %v340
    %743 = vmatprep.subr.mxu0 %v349
    %744 = vmatpush1.msra.mxu0 %v348
    %745 = vmatprep.subr.mxu0 %v357
    %746 = vmatpush1.msra.mxu0 %v356
    %747 = vmatprep.mubr.f32.mxu0 %v629
    %748 = vmatmul.mubr.f32.gmra.mrb[0].mxu0 %v625
    %v749 = vpop.f32.mrb[0].mxu0
    %v750 = vadd.f32 %v646, %v749
    %v751 = vpop.f32.mrb[0].mxu0
    %v752 = vadd.f32 %v650, %v751
    %753 = vdwg.mxu0
    %754 = vmatprep.subr.mxu0 %v365
    %755 = vmatpush1.msra.mxu0 %v364
    %756 = vmatprep.subr.mxu0 %v373
    %757 = vmatpush1.msra.mxu0 %v372
    %758 = vmatprep.subr.mxu0 %v381
    %759 = vmatpush1.msra.mxu0 %v380
    %760 = vmatprep.subr.mxu0 %v389
    %761 = vmatpush1.msra.mxu0 %v388
    %762 = vmatprep.subr.mxu0 %v397
    %763 = vmatpush1.msra.mxu0 %v396
    %764 = vmatprep.subr.mxu0 %v405
    %765 = vmatpush1.msra.mxu0 %v404
    %766 = vmatprep.subr.mxu0 %v413
    %767 = vmatpush1.msra.mxu0 %v412
    %768 = vmatprep.subr.mxu0 %v421
    %769 = vmatpush1.msra.mxu0 %v420
    %770 = vmatprep.subr.mxu0 %v429
    %771 = vmatpush1.msra.mxu0 %v428
    %772 = vmatprep.subr.mxu0 %v437
    %773 = vmatpush1.msra.mxu0 %v436
    %774 = vmatprep.subr.mxu0 %v445
    %775 = vmatpush1.msra.mxu0 %v444
    %776 = vmatprep.subr.mxu0 %v453
    %777 = vmatpush1.msra.mxu0 %v452
    %778 = vmatprep.subr.mxu0 %v461
    %779 = vmatpush1.msra.mxu0 %v460
    %780 = vmatprep.subr.mxu0 %v469
    %781 = vmatpush1.msra.mxu0 %v468
    %782 = vmatprep.subr.mxu0 %v477
    %783 = vmatpush1.msra.mxu0 %v476
    %784 = vmatprep.subr.mxu0 %v485
    %785 = vmatpush1.msra.mxu0 %v484
    %786 = vmatprep.subr.mxu0 %v493
    %787 = vmatpush1.msra.mxu0 %v492
    %788 = vmatprep.subr.mxu0 %v501
    %789 = vmatpush1.msra.mxu0 %v500
    %790 = vmatprep.subr.mxu0 %v509
    %791 = vmatpush1.msra.mxu0 %v508
    %792 = vmatprep.subr.mxu0 %v517
    %793 = vmatpush1.msra.mxu0 %v516
    %794 = vmatprep.subr.mxu0 %v525
    %795 = vmatpush1.msra.mxu0 %v524
    %796 = vmatprep.subr.mxu0 %v533
    %797 = vmatpush1.msra.mxu0 %v532
    %798 = vmatprep.subr.mxu0 %v541
    %799 = vmatpush1.msra.mxu0 %v540
    %800 = vmatprep.subr.mxu0 %v549
    %801 = vmatpush1.msra.mxu0 %v548
    %802 = vmatprep.subr.mxu0 %v557
    %803 = vmatpush1.msra.mxu0 %v556
    %804 = vmatprep.subr.mxu0 %v565
    %805 = vmatpush1.msra.mxu0 %v564
    %806 = vmatprep.subr.mxu0 %v573
    %807 = vmatpush1.msra.mxu0 %v572
    %808 = vmatprep.subr.mxu0 %v581
    %809 = vmatpush1.msra.mxu0 %v580
    %810 = vmatprep.subr.mxu0 %v589
    %811 = vmatpush1.msra.mxu0 %v588
    %812 = vmatprep.subr.mxu0 %v597
    %813 = vmatpush1.msra.mxu0 %v596
    %814 = vmatprep.subr.mxu0 %v605
    %815 = vmatpush1.msra.mxu0 %v604
    %816 = vmatprep.subr.mxu0 %v613
    %817 = vmatpush1.msra.mxu0 %v612
    %818 = vmatprep.mubr.f32.mxu0 %v637
    %819 = vmatmul.mubr.f32.gmra.mrb[0].mxu0 %v633
    %v820 = vpop.f32.mrb[0].mxu0
    %v821 = vadd.f32 %v750, %v820
    %v822 = vpop.f32.mrb[0].mxu0
    %v823 = vadd.f32 %v752, %v822
    %824 = vdwg.mxu0
    %825 = vmatprep.subr.mxu0 %v111
    %826 = vmatpush1.msra.mxu0 %v110
    %827 = vmatprep.subr.mxu0 %v119
    %828 = vmatpush1.msra.mxu0 %v118
    %829 = vmatprep.subr.mxu0 %v127
    %830 = vmatpush1.msra.mxu0 %v126
    %831 = vmatprep.subr.mxu0 %v135
    %832 = vmatpush1.msra.mxu0 %v134
    %833 = vmatprep.subr.mxu0 %v143
    %834 = vmatpush1.msra.mxu0 %v142
    %835 = vmatprep.subr.mxu0 %v151
    %836 = vmatpush1.msra.mxu0 %v150
    %837 = vmatprep.subr.mxu0 %v159
    %838 = vmatpush1.msra.mxu0 %v158
    %839 = vmatprep.subr.mxu0 %v167
    %840 = vmatpush1.msra.mxu0 %v166
    %841 = vmatprep.subr.mxu0 %v175
    %842 = vmatpush1.msra.mxu0 %v174
    %843 = vmatprep.subr.mxu0 %v183
    %844 = vmatpush1.msra.mxu0 %v182
    %845 = vmatprep.subr.mxu0 %v191
    %846 = vmatpush1.msra.mxu0 %v190
    %847 = vmatprep.subr.mxu0 %v199
    %848 = vmatpush1.msra.mxu0 %v198
    %849 = vmatprep.subr.mxu0 %v207
    %850 = vmatpush1.msra.mxu0 %v206
    %851 = vmatprep.subr.mxu0 %v215
    %852 = vmatpush1.msra.mxu0 %v214
    %853 = vmatprep.subr.mxu0 %v223
    %854 = vmatpush1.msra.mxu0 %v222
    %855 = vmatprep.subr.mxu0 %v231
    %856 = vmatpush1.msra.mxu0 %v230
    %857 = vmatprep.subr.mxu0 %v239
    %858 = vmatpush1.msra.mxu0 %v238
    %859 = vmatprep.subr.mxu0 %v247
    %860 = vmatpush1.msra.mxu0 %v246
    %861 = vmatprep.subr.mxu0 %v255
    %862 = vmatpush1.msra.mxu0 %v254
    %863 = vmatprep.subr.mxu0 %v263
    %864 = vmatpush1.msra.mxu0 %v262
    %865 = vmatprep.subr.mxu0 %v271
    %866 = vmatpush1.msra.mxu0 %v270
    %867 = vmatprep.subr.mxu0 %v279
    %868 = vmatpush1.msra.mxu0 %v278
    %869 = vmatprep.subr.mxu0 %v287
    %870 = vmatpush1.msra.mxu0 %v286
    %871 = vmatprep.subr.mxu0 %v295
    %872 = vmatpush1.msra.mxu0 %v294
    %873 = vmatprep.subr.mxu0 %v303
    %874 = vmatpush1.msra.mxu0 %v302
    %875 = vmatprep.subr.mxu0 %v311
    %876 = vmatpush1.msra.mxu0 %v310
    %877 = vmatprep.subr.mxu0 %v319
    %878 = vmatpush1.msra.mxu0 %v318
    %879 = vmatprep.subr.mxu0 %v327
    %880 = vmatpush1.msra.mxu0 %v326
    %881 = vmatprep.subr.mxu0 %v335
    %882 = vmatpush1.msra.mxu0 %v334
    %883 = vmatprep.subr.mxu0 %v343
    %884 = vmatpush1.msra.mxu0 %v342
    %885 = vmatprep.subr.mxu0 %v351
    %886 = vmatpush1.msra.mxu0 %v350
    %887 = vmatprep.subr.mxu0 %v359
    %888 = vmatpush1.msra.mxu0 %v358
    %889 = vmatprep.mubr.f32.mxu0 %v629
    %890 = vmatmul.mubr.f32.gmra.mrb[0].mxu0 %v625
    %v891 = vpop.f32.mrb[0].mxu0
    %v892 = vadd.f32 %v654, %v891
    %v893 = vpop.f32.mrb[0].mxu0
    %v894 = vadd.f32 %v658, %v893
    %895 = vdwg.mxu0
    %896 = vmatprep.subr.mxu0 %v367
    %897 = vmatpush1.msra.mxu0 %v366
    %898 = vmatprep.subr.mxu0 %v375
    %899 = vmatpush1.msra.mxu0 %v374
    %900 = vmatprep.subr.mxu0 %v383
    %901 = vmatpush1.msra.mxu0 %v382
    %902 = vmatprep.subr.mxu0 %v391
    %903 = vmatpush1.msra.mxu0 %v390
    %904 = vmatprep.subr.mxu0 %v399
    %905 = vmatpush1.msra.mxu0 %v398
    %906 = vmatprep.subr.mxu0 %v407
    %907 = vmatpush1.msra.mxu0 %v406
    %908 = vmatprep.subr.mxu0 %v415
    %909 = vmatpush1.msra.mxu0 %v414
    %910 = vmatprep.subr.mxu0 %v423
    %911 = vmatpush1.msra.mxu0 %v422
    %912 = vmatprep.subr.mxu0 %v431
    %913 = vmatpush1.msra.mxu0 %v430
    %914 = vmatprep.subr.mxu0 %v439
    %915 = vmatpush1.msra.mxu0 %v438
    %916 = vmatprep.subr.mxu0 %v447
    %917 = vmatpush1.msra.mxu0 %v446
    %918 = vmatprep.subr.mxu0 %v455
    %919 = vmatpush1.msra.mxu0 %v454
    %920 = vmatprep.subr.mxu0 %v463
    %921 = vmatpush1.msra.mxu0 %v462
    %922 = vmatprep.subr.mxu0 %v471
    %923 = vmatpush1.msra.mxu0 %v470
    %924 = vmatprep.subr.mxu0 %v479
    %925 = vmatpush1.msra.mxu0 %v478
    %926 = vmatprep.subr.mxu0 %v487
    %927 = vmatpush1.msra.mxu0 %v486
    %928 = vmatprep.subr.mxu0 %v495
    %929 = vmatpush1.msra.mxu0 %v494
    %930 = vmatprep.subr.mxu0 %v503
    %931 = vmatpush1.msra.mxu0 %v502
    %932 = vmatprep.subr.mxu0 %v511
    %933 = vmatpush1.msra.mxu0 %v510
    %934 = vmatprep.subr.mxu0 %v519
    %935 = vmatpush1.msra.mxu0 %v518
    %936 = vmatprep.subr.mxu0 %v527
    %937 = vmatpush1.msra.mxu0 %v526
    %938 = vmatprep.subr.mxu0 %v535
    %939 = vmatpush1.msra.mxu0 %v534
    %940 = vmatprep.subr.mxu0 %v543
    %941 = vmatpush1.msra.mxu0 %v542
    %942 = vmatprep.subr.mxu0 %v551
    %943 = vmatpush1.msra.mxu0 %v550
    %944 = vmatprep.subr.mxu0 %v559
    %945 = vmatpush1.msra.mxu0 %v558
    %946 = vmatprep.subr.mxu0 %v567
    %947 = vmatpush1.msra.mxu0 %v566
    %948 = vmatprep.subr.mxu0 %v575
    %949 = vmatpush1.msra.mxu0 %v574
    %950 = vmatprep.subr.mxu0 %v583
    %951 = vmatpush1.msra.mxu0 %v582
    %952 = vmatprep.subr.mxu0 %v591
    %953 = vmatpush1.msra.mxu0 %v590
    %954 = vmatprep.subr.mxu0 %v599
    %955 = vmatpush1.msra.mxu0 %v598
    %956 = vmatprep.subr.mxu0 %v607
    %957 = vmatpush1.msra.mxu0 %v606
    %958 = vmatprep.subr.mxu0 %v615
    %959 = vmatpush1.msra.mxu0 %v614
    %960 = vmatprep.mubr.f32.mxu0 %v637
    %961 = vmatmul.mubr.f32.gmra.mrb[0].mxu0 %v633
    %v962 = vpop.f32.mrb[0].mxu0
    %v963 = vadd.f32 %v892, %v962
    %v964 = vpop.f32.mrb[0].mxu0
    %v965 = vadd.f32 %v894, %v964
    %966 = vdwg.mxu0
    %967 = vmatprep.subr.mxu0 %v113
    %968 = vmatpush1.msra.mxu0 %v112
    %969 = vmatprep.subr.mxu0 %v121
    %970 = vmatpush1.msra.mxu0 %v120
    %971 = vmatprep.subr.mxu0 %v129
    %972 = vmatpush1.msra.mxu0 %v128
    %973 = vmatprep.subr.mxu0 %v137
    %974 = vmatpush1.msra.mxu0 %v136
    %975 = vmatprep.subr.mxu0 %v145
    %976 = vmatpush1.msra.mxu0 %v144
    %977 = vmatprep.subr.mxu0 %v153
    %978 = vmatpush1.msra.mxu0 %v152
    %979 = vmatprep.subr.mxu0 %v161
    %980 = vmatpush1.msra.mxu0 %v160
    %981 = vmatprep.subr.mxu0 %v169
    %982 = vmatpush1.msra.mxu0 %v168
    %983 = vmatprep.subr.mxu0 %v177
    %984 = vmatpush1.msra.mxu0 %v176
    %985 = vmatprep.subr.mxu0 %v185
    %986 = vmatpush1.msra.mxu0 %v184
    %987 = vmatprep.subr.mxu0 %v193
    %988 = vmatpush1.msra.mxu0 %v192
    %989 = vmatprep.subr.mxu0 %v201
    %990 = vmatpush1.msra.mxu0 %v200
    %991 = vmatprep.subr.mxu0 %v209
    %992 = vmatpush1.msra.mxu0 %v208
    %993 = vmatprep.subr.mxu0 %v217
    %994 = vmatpush1.msra.mxu0 %v216
    %995 = vmatprep.subr.mxu0 %v225
    %996 = vmatpush1.msra.mxu0 %v224
    %997 = vmatprep.subr.mxu0 %v233
    %998 = vmatpush1.msra.mxu0 %v232
    %999 = vmatprep.subr.mxu0 %v241
    %1000 = vmatpush1.msra.mxu0 %v240
    %1001 = vmatprep.subr.mxu0 %v249
    %1002 = vmatpush1.msra.mxu0 %v248
    %1003 = vmatprep.subr.mxu0 %v257
    %1004 = vmatpush1.msra.mxu0 %v256
    %1005 = vmatprep.subr.mxu0 %v265
    %1006 = vmatpush1.msra.mxu0 %v264
    %1007 = vmatprep.subr.mxu0 %v273
    %1008 = vmatpush1.msra.mxu0 %v272
    %1009 = vmatprep.subr.mxu0 %v281
    %1010 = vmatpush1.msra.mxu0 %v280
    %1011 = vmatprep.subr.mxu0 %v289
    %1012 = vmatpush1.msra.mxu0 %v288
    %1013 = vmatprep.subr.mxu0 %v297
    %1014 = vmatpush1.msra.mxu0 %v296
    %1015 = vmatprep.subr.mxu0 %v305
    %1016 = vmatpush1.msra.mxu0 %v304
    %1017 = vmatprep.subr.mxu0 %v313
    %1018 = vmatpush1.msra.mxu0 %v312
    %1019 = vmatprep.subr.mxu0 %v321
    %1020 = vmatpush1.msra.mxu0 %v320
    %1021 = vmatprep.subr.mxu0 %v329
    %1022 = vmatpush1.msra.mxu0 %v328
    %1023 = vmatprep.subr.mxu0 %v337
    %1024 = vmatpush1.msra.mxu0 %v336
    %1025 = vmatprep.subr.mxu0 %v345
    %1026 = vmatpush1.msra.mxu0 %v344
    %1027 = vmatprep.subr.mxu0 %v353
    %1028 = vmatpush1.msra.mxu0 %v352
    %1029 = vmatprep.subr.mxu0 %v361
    %1030 = vmatpush1.msra.mxu0 %v360
    %1031 = vmatprep.mubr.f32.mxu0 %v629
    %1032 = vmatmul.mubr.f32.gmra.mrb[0].mxu0 %v625
    %v1033 = vpop.f32.mrb[0].mxu0
    %v1034 = vadd.f32 %v662, %v1033
    %v1035 = vpop.f32.mrb[0].mxu0
    %v1036 = vadd.f32 %v666, %v1035
    %1037 = vdwg.mxu0
    %1038 = vmatprep.subr.mxu0 %v369
    %1039 = vmatpush1.msra.mxu0 %v368
    %1040 = vmatprep.subr.mxu0 %v377
    %1041 = vmatpush1.msra.mxu0 %v376
    %1042 = vmatprep.subr.mxu0 %v385
    %1043 = vmatpush1.msra.mxu0 %v384
    %1044 = vmatprep.subr.mxu0 %v393
    %1045 = vmatpush1.msra.mxu0 %v392
    %1046 = vmatprep.subr.mxu0 %v401
    %1047 = vmatpush1.msra.mxu0 %v400
    %1048 = vmatprep.subr.mxu0 %v409
    %1049 = vmatpush1.msra.mxu0 %v408
    %1050 = vmatprep.subr.mxu0 %v417
    %1051 = vmatpush1.msra.mxu0 %v416
    %1052 = vmatprep.subr.mxu0 %v425
    %1053 = vmatpush1.msra.mxu0 %v424
    %1054 = vmatprep.subr.mxu0 %v433
    %1055 = vmatpush1.msra.mxu0 %v432
    %1056 = vmatprep.subr.mxu0 %v441
    %1057 = vmatpush1.msra.mxu0 %v440
    %1058 = vmatprep.subr.mxu0 %v449
    %1059 = vmatpush1.msra.mxu0 %v448
    %1060 = vmatprep.subr.mxu0 %v457
    %1061 = vmatpush1.msra.mxu0 %v456
    %1062 = vmatprep.subr.mxu0 %v465
    %1063 = vmatpush1.msra.mxu0 %v464
    %1064 = vmatprep.subr.mxu0 %v473
    %1065 = vmatpush1.msra.mxu0 %v472
    %1066 = vmatprep.subr.mxu0 %v481
    %1067 = vmatpush1.msra.mxu0 %v480
    %1068 = vmatprep.subr.mxu0 %v489
    %1069 = vmatpush1.msra.mxu0 %v488
    %1070 = vmatprep.subr.mxu0 %v497
    %1071 = vmatpush1.msra.mxu0 %v496
    %1072 = vmatprep.subr.mxu0 %v505
    %1073 = vmatpush1.msra.mxu0 %v504
    %1074 = vmatprep.subr.mxu0 %v513
    %1075 = vmatpush1.msra.mxu0 %v512
    %1076 = vmatprep.subr.mxu0 %v521
    %1077 = vmatpush1.msra.mxu0 %v520
    %1078 = vmatprep.subr.mxu0 %v529
    %1079 = vmatpush1.msra.mxu0 %v528
    %1080 = vmatprep.subr.mxu0 %v537
    %1081 = vmatpush1.msra.mxu0 %v536
    %1082 = vmatprep.subr.mxu0 %v545
    %1083 = vmatpush1.msra.mxu0 %v544
    %1084 = vmatprep.subr.mxu0 %v553
    %1085 = vmatpush1.msra.mxu0 %v552
    %1086 = vmatprep.subr.mxu0 %v561
    %1087 = vmatpush1.msra.mxu0 %v560
    %1088 = vmatprep.subr.mxu0 %v569
    %1089 = vmatpush1.msra.mxu0 %v568
    %1090 = vmatprep.subr.mxu0 %v577
    %1091 = vmatpush1.msra.mxu0 %v576
    %1092 = vmatprep.subr.mxu0 %v585
    %1093 = vmatpush1.msra.mxu0 %v584
    %1094 = vmatprep.subr.mxu0 %v593
    %1095 = vmatpush1.msra.mxu0 %v592
    %1096 = vmatprep.subr.mxu0 %v601
    %1097 = vmatpush1.msra.mxu0 %v600
    %1098 = vmatprep.subr.mxu0 %v609
    %1099 = vmatpush1.msra.mxu0 %v608
    %1100 = vmatprep.subr.mxu0 %v617
    %1101 = vmatpush1.msra.mxu0 %v616
    %1102 = vmatprep.mubr.f32.mxu0 %v637
    %1103 = vmatmul.mubr.f32.gmra.mrb[0].mxu0 %v633
    %v1104 = vpop.f32.mrb[0].mxu0
    %v1105 = vadd.f32 %v1034, %v1104
    %v1106 = vpop.f32.mrb[0].mxu0
    %v1107 = vadd.f32 %v1036, %v1106
    %1108 = vdwg.mxu0
    %1109 = vmatprep.subr.mxu0 %v115
    %1110 = vmatpush1.msra.mxu0 %v114
    %1111 = vmatprep.subr.mxu0 %v123
    %1112 = vmatpush1.msra.mxu0 %v122
    %1113 = vmatprep.subr.mxu0 %v131
    %1114 = vmatpush1.msra.mxu0 %v130
    %1115 = vmatprep.subr.mxu0 %v139
    %1116 = vmatpush1.msra.mxu0 %v138
    %1117 = vmatprep.subr.mxu0 %v147
    %1118 = vmatpush1.msra.mxu0 %v146
    %1119 = vmatprep.subr.mxu0 %v155
    %1120 = vmatpush1.msra.mxu0 %v154
    %1121 = vmatprep.subr.mxu0 %v163
    %1122 = vmatpush1.msra.mxu0 %v162
    %1123 = vmatprep.subr.mxu0 %v171
    %1124 = vmatpush1.msra.mxu0 %v170
    %1125 = vmatprep.subr.mxu0 %v179
    %1126 = vmatpush1.msra.mxu0 %v178
    %1127 = vmatprep.subr.mxu0 %v187
    %1128 = vmatpush1.msra.mxu0 %v186
    %1129 = vmatprep.subr.mxu0 %v195
    %1130 = vmatpush1.msra.mxu0 %v194
    %1131 = vmatprep.subr.mxu0 %v203
    %1132 = vmatpush1.msra.mxu0 %v202
    %1133 = vmatprep.subr.mxu0 %v211
    %1134 = vmatpush1.msra.mxu0 %v210
    %1135 = vmatprep.subr.mxu0 %v219
    %1136 = vmatpush1.msra.mxu0 %v218
    %1137 = vmatprep.subr.mxu0 %v227
    %1138 = vmatpush1.msra.mxu0 %v226
    %1139 = vmatprep.subr.mxu0 %v235
    %1140 = vmatpush1.msra.mxu0 %v234
    %1141 = vmatprep.subr.mxu0 %v243
    %1142 = vmatpush1.msra.mxu0 %v242
    %1143 = vmatprep.subr.mxu0 %v251
    %1144 = vmatpush1.msra.mxu0 %v250
    %1145 = vmatprep.subr.mxu0 %v259
    %1146 = vmatpush1.msra.mxu0 %v258
    %1147 = vmatprep.subr.mxu0 %v267
    %1148 = vmatpush1.msra.mxu0 %v266
    %1149 = vmatprep.subr.mxu0 %v275
    %1150 = vmatpush1.msra.mxu0 %v274
    %1151 = vmatprep.subr.mxu0 %v283
    %1152 = vmatpush1.msra.mxu0 %v282
    %1153 = vmatprep.subr.mxu0 %v291
    %1154 = vmatpush1.msra.mxu0 %v290
    %1155 = vmatprep.subr.mxu0 %v299
    %1156 = vmatpush1.msra.mxu0 %v298
    %1157 = vmatprep.subr.mxu0 %v307
    %1158 = vmatpush1.msra.mxu0 %v306
    %1159 = vmatprep.subr.mxu0 %v315
    %1160 = vmatpush1.msra.mxu0 %v314
    %1161 = vmatprep.subr.mxu0 %v323
    %1162 = vmatpush1.msra.mxu0 %v322
    %1163 = vmatprep.subr.mxu0 %v331
    %1164 = vmatpush1.msra.mxu0 %v330
    %1165 = vmatprep.subr.mxu0 %v339
    %1166 = vmatpush1.msra.mxu0 %v338
    %1167 = vmatprep.subr.mxu0 %v347
    %1168 = vmatpush1.msra.mxu0 %v346
    %1169 = vmatprep.subr.mxu0 %v355
    %1170 = vmatpush1.msra.mxu0 %v354
    %1171 = vmatprep.subr.mxu0 %v363
    %1172 = vmatpush1.msra.mxu0 %v362
    %1173 = vmatprep.mubr.f32.mxu0 %v629
    %1174 = vmatmul.mubr.f32.gmra.mrb[0].mxu0 %v625
    %v1175 = vpop.f32.mrb[0].mxu0
    %v1176 = vadd.f32 %v670, %v1175
    %v1177 = vpop.f32.mrb[0].mxu0
    %v1178 = vadd.f32 %v674, %v1177
    %1179 = vdwg.mxu0
    %1180 = vmatprep.subr.mxu0 %v371
    %1181 = vmatpush1.msra.mxu0 %v370
    %1182 = vmatprep.subr.mxu0 %v379
    %1183 = vmatpush1.msra.mxu0 %v378
    %1184 = vmatprep.subr.mxu0 %v387
    %1185 = vmatpush1.msra.mxu0 %v386
    %1186 = vmatprep.subr.mxu0 %v395
    %1187 = vmatpush1.msra.mxu0 %v394
    %1188 = vmatprep.subr.mxu0 %v403
    %1189 = vmatpush1.msra.mxu0 %v402
    %1190 = vmatprep.subr.mxu0 %v411
    %1191 = vmatpush1.msra.mxu0 %v410
    %1192 = vmatprep.subr.mxu0 %v419
    %1193 = vmatpush1.msra.mxu0 %v418
    %1194 = vmatprep.subr.mxu0 %v427
    %1195 = vmatpush1.msra.mxu0 %v426
    %1196 = vmatprep.subr.mxu0 %v435
    %1197 = vmatpush1.msra.mxu0 %v434
    %1198 = vmatprep.subr.mxu0 %v443
    %1199 = vmatpush1.msra.mxu0 %v442
    %1200 = vmatprep.subr.mxu0 %v451
    %1201 = vmatpush1.msra.mxu0 %v450
    %1202 = vmatprep.subr.mxu0 %v459
    %1203 = vmatpush1.msra.mxu0 %v458
    %1204 = vmatprep.subr.mxu0 %v467
    %1205 = vmatpush1.msra.mxu0 %v466
    %1206 = vmatprep.subr.mxu0 %v475
    %1207 = vmatpush1.msra.mxu0 %v474
    %1208 = vmatprep.subr.mxu0 %v483
    %1209 = vmatpush1.msra.mxu0 %v482
    %1210 = vmatprep.subr.mxu0 %v491
    %1211 = vmatpush1.msra.mxu0 %v490
    %1212 = vmatprep.subr.mxu0 %v499
    %1213 = vmatpush1.msra.mxu0 %v498
    %1214 = vmatprep.subr.mxu0 %v507
    %1215 = vmatpush1.msra.mxu0 %v506
    %1216 = vmatprep.subr.mxu0 %v515
    %1217 = vmatpush1.msra.mxu0 %v514
    %1218 = vmatprep.subr.mxu0 %v523
    %1219 = vmatpush1.msra.mxu0 %v522
    %1220 = vmatprep.subr.mxu0 %v531
    %1221 = vmatpush1.msra.mxu0 %v530
    %1222 = vmatprep.subr.mxu0 %v539
    %1223 = vmatpush1.msra.mxu0 %v538
    %1224 = vmatprep.subr.mxu0 %v547
    %1225 = vmatpush1.msra.mxu0 %v546
    %1226 = vmatprep.subr.mxu0 %v555
    %1227 = vmatpush1.msra.mxu0 %v554
    %1228 = vmatprep.subr.mxu0 %v563
    %1229 = vmatpush1.msra.mxu0 %v562
    %1230 = vmatprep.subr.mxu0 %v571
    %1231 = vmatpush1.msra.mxu0 %v570
    %1232 = vmatprep.subr.mxu0 %v579
    %1233 = vmatpush1.msra.mxu0 %v578
    %1234 = vmatprep.subr.mxu0 %v587
    %1235 = vmatpush1.msra.mxu0 %v586
    %1236 = vmatprep.subr.mxu0 %v595
    %1237 = vmatpush1.msra.mxu0 %v594
    %1238 = vmatprep.subr.mxu0 %v603
    %1239 = vmatpush1.msra.mxu0 %v602
    %1240 = vmatprep.subr.mxu0 %v611
    %1241 = vmatpush1.msra.mxu0 %v610
    %1242 = vmatprep.subr.mxu0 %v619
    %1243 = vmatpush1.msra.mxu0 %v618
    %1244 = vmatprep.mubr.f32.mxu0 %v637
    %1245 = vmatmul.mubr.f32.gmra.mrb[0].mxu0 %v633
    %v1246 = vpop.f32.mrb[0].mxu0
    %v1247 = vadd.f32 %v1176, %v1246
    %v1248 = vpop.f32.mrb[0].mxu0
    %v1249 = vadd.f32 %v1178, %v1248
    %1250 = vdwg.mxu0
    %v1251 = vxor.u32 %v821, 2147483648
    %v1252 = vxor.u32 %v823, 2147483648
    %v1253 = vmul.f32 %v1251, 1.442695
    %v1254 = vpow.pop %v1253
    %v1255 = vmul.f32 %v1252, 1.442695
    %v1256 = vpow.pop %v1255
    %v1257 = vadd.f32 %v1254, 1.0
    %v1258 = vadd.f32 %v1256, 1.0
    %v1259 = vrcp.pop %v1257
    %v1260 = vmul.f32 1.0, %v1259
    %v1261 = vrcp.pop %v1258
    %v1262 = vmul.f32 1.0, %v1261
    %v1263 = vxor.u32 %v963, 2147483648
    %v1264 = vxor.u32 %v965, 2147483648
    %v1265 = vmul.f32 %v1263, 1.442695
    %v1266 = vpow.pop %v1265
    %v1267 = vmul.f32 %v1264, 1.442695
    %v1268 = vpow.pop %v1267
    %v1269 = vadd.f32 %v1266, 1.0
    %v1270 = vadd.f32 %v1268, 1.0
    %v1271 = vrcp.pop %v1269
    %v1272 = vmul.f32 1.0, %v1271
    %v1273 = vrcp.pop %v1270
    %v1274 = vmul.f32 1.0, %v1273
    %v1275 = vtanh.pop %v1105
    %v1276 = vtanh.pop %v1107
    %v1277 = vxor.u32 %v1247, 2147483648
    %v1278 = vxor.u32 %v1249, 2147483648
    %v1279 = vmul.f32 %v1277, 1.442695
    %v1280 = vpow.pop %v1279
    %v1281 = vmul.f32 %v1278, 1.442695
    %v1282 = vpow.pop %v1281
    %v1283 = vadd.f32 %v1280, 1.0
    %v1284 = vadd.f32 %v1282, 1.0
    %v1285 = vrcp.pop %v1283
    %v1286 = vmul.f32 1.0, %v1285
    %v1287 = vrcp.pop %v1284
    %v1288 = vmul.f32 1.0, %v1287
    %v1289 = vld [vmem:[#allocation3] sm:$0x3]
    %v1291 = vlaneseq
    %v1292 = vshrl.u32 %v1291, 7
    %v1293 = vsub.s32 0, %v1292
    %v1294 = vrot.slane %v1289, %v1293
    %v1295 = vlaneseq
    %v1296 = vshrl.u32 %v1295, 7
    %v1297 = vsub.s32 1, %v1296
    %v1298 = vrot.slane %v1289, %v1297
    %v1301 = vmul.f32 %v1272, %v1294
    %v1302 = vmul.f32 %v1274, %v1298
    %v1303 = vmul.f32 %v1260, %v1275
    %v1304 = vmul.f32 %v1262, %v1276
    %v1305 = vadd.f32 %v1301, %v1303
    %v1306 = vadd.f32 %v1302, %v1304
    %v1307 = vtanh.pop %v1305
    %v1308 = vtanh.pop %v1306
    %v1309 = vmul.f32 %v1286, %v1307
    %v1310 = vmul.f32 %v1288, %v1308
    %v1313 = vcombine.low %v1305, %v1306
    %v1315 = vunpack.c.l.s4 1966171168
    %v1316 = vunpack.c.0.s8 %v1315
    %v1317 = vlaneseq
    %v1318 = vshrl.u32 %v1317, 7
    %v1319 = vsub.s32 %v1316, %v1318
    %v1320 = vrot.slane %v1313, %v1319
    %v1322 = vunpack.c.l.s4 1966171168
    %v1323 = vunpack.c.0.s8 %v1322
    %v1324 = vlaneseq
    %v1325 = vshrl.u32 %v1324, 7
    %v1326 = vsub.s32 %v1323, %v1325
    %v1327 = vrot.slane %v1320, %v1326
    %1329 = vst.msk [vmem:[#allocation3] sm:$0x3] %vm92, %v1327
    %v1332 = vcombine.low %v1309, %v1310
    %v1334 = vunpack.c.l.s4 1966171168
    %v1335 = vunpack.c.0.s8 %v1334
    %v1336 = vlaneseq
    %v1337 = vshrl.u32 %v1336, 7
    %v1338 = vsub.s32 %v1335, %v1337
    %v1339 = vrot.slane %v1332, %v1338
    %v1341 = vunpack.c.l.s4 1966171168
    %v1342 = vunpack.c.0.s8 %v1341
    %v1343 = vlaneseq
    %v1344 = vshrl.u32 %v1343, 7
    %v1345 = vsub.s32 %v1342, %v1344
    %v1346 = vrot.slane %v1339, %v1345
    %1348 = vst.msk [vmem:[#allocation2 + $0x2] sm:$0x3] %vm92, %v1346
    %1349 = vst.msk [vmem:[#allocation15] ss:$8 sm:$0x3] %vm92, %v1346
    %1350 = vst.msk [vmem:[#allocation15] ss:$8 sm:$0x0] %vm92, %v1346
    %v1351 = vld [vmem:[#allocation3] sm:$0x3]
    %1352 = vst.msk [vmem:[#allocation16] sm:$0x3] %vm92, %v1351
    // Predicated region
    $region42: #{tpu_custom_call.1} parent=1 // pred_check
      _
    $region43: #{tpu_custom_call.1} parent=1 // pred_check_branch
      %1354 = sbr.rel (0) target = $region45
    $region44: #{tpu_custom_call.1} parent=1 // pred_region
      %s1356 = ssub.s32 256, 256
      %1357 = vsyncadd [#allocation8], %s1356
      %s1359 = sshll.u32 [#allocation15], 4
      %s1360 = int_to_ptr.vmem [resolvable:$true] %s1359
      %1362 = dma.vmem_to_hbm [thread:$0]  %s1360, 256, %s6, [#allocation8]
    $region45: #{tpu_custom_call.1} parent=1 // pred_fallthru
      _
    // Predicated region
    $region46: #{tpu_custom_call.1} parent=1 // pred_check
      _
    $region47: #{tpu_custom_call.1} parent=1 // pred_check_branch
      %1364 = sbr.rel (0) target = $region49
    $region48: #{tpu_custom_call.1} parent=1 // pred_region
      %s1366 = ssub.s32 32, 32
      %1367 = vsyncadd [#allocation17], %s1366
      %s1369 = sshll.u32 [#allocation16], 4
      %s1370 = int_to_ptr.vmem [resolvable:$true] %s1369
      %1372 = dma.vmem_to_hbm [thread:$0]  %s1370, 32, %s7, [#allocation17]
    $region49: #{tpu_custom_call.1} parent=1 // pred_fallthru
      _
    // Predicated region
    $region50: #{tpu_custom_call.1} parent=1 // pred_check
      _
    $region51: #{tpu_custom_call.1} parent=1 // pred_check_branch
      %1374 = sbr.rel (0) target = $region53
    $region52: #{tpu_custom_call.1} parent=1 // pred_region
      %1375 = dma.done [#allocation8], 256
    $region53: #{tpu_custom_call.1} parent=1 // pred_fallthru
      _
    // Predicated region
    $region54: #{tpu_custom_call.1} parent=1 // pred_check
      _
    $region55: #{tpu_custom_call.1} parent=1 // pred_check_branch
      %1377 = sbr.rel (0) target = $region57
    $region56: #{tpu_custom_call.1} parent=1 // pred_region
      %1378 = dma.done [#allocation17], 32
    $region57: #{tpu_custom_call.1} parent=1 // pred_fallthru
      _
    %1379 = vsyncpa [#allocation7], 1
    %1380 = vsyncpa [#allocation10], 1
    %1381 = vsyncpa [#allocation13], 1
    %1382 = vsyncpa [#allocation8], 1
    %1383 = vsyncpa [#allocation17], 1

</llo_original>
